<compile_context>
chip_gen: v7x
topology: tpu7x:2x2x1
jax: 0.10.0
libtpu: 0.0.40
codegen_flags: <defaults>
</compile_context>

<pallas_src>
import functools

import jax
import jax.numpy as jnp
from jax.experimental import pallas as pl
from jax.experimental.pallas import tpu as pltpu

LEAKY_SLOPE = 0.01      # nn.LeakyReLU default negative_slope
SUBLANE = 8
LANE = 128


def _round_up(n, m):
    return ((n + m - 1) // m) * m


# -----------------------------------------------------------------------------
# Single fused kernel: bidirectional LSTM recurrence + MLP head.
#   x_ref    : (S*Bp, I)   input, batch zero-padded to Bp, rows in (time, batch)
#   wih_ref  : (I, 8H)     [fwd | bwd] input->gates, gate order [i, f, o, g]
#   bih_ref  : (1, 8H)     b_ih + b_hh, same layout
#   whh_ref  : (H, 8H)     [whh_fwd | whh_bwd] hidden->gates, order [i, f, o, g]
#   w2/b2    : (2H, 512), (1, 512)   Linear(2H, 500) zero-padded
#   w3/b3    : (512, 128), (1, 128)  Linear(500, 100) zero-padded
#   w4/b4    : (128, 128), (1, 128)  Linear(100, 2) zero-padded (cols 0:2 real)
#   out_ref  : (S*Bp, 128) lane-dense padded logits slab
# -----------------------------------------------------------------------------
def _fused_kernel(x_ref, wih_ref, bih_ref, whh_ref,
                  w2_ref, b2_ref, w3_ref, b3_ref, w4_ref, b4_ref,
                  out_ref, *, S, Bp, H):
    H2, H3, H4 = 2 * H, 3 * H, 4 * H

    # Hoisted input projection (bias folded in): one (S*Bp, I) @ (I, 8H) dot.
    x = x_ref[...]
    proj = jnp.dot(x, wih_ref[...],
                   preferred_element_type=jnp.float32) + bih_ref[...]   # (S*Bp, 8H)

    # Recurrent weights loaded once, outside the time loop.
    whh = whh_ref[...]                                                  # (H, 8H)

    def gate_math(gates, c):
        # gate order [i | f | o | g]; sigmoid(x) == 0.5*(tanh(x/2)+1):
        # one EUP transcendental per gate block on the serial chain.
        sg = 0.5 * (jnp.tanh(0.5 * gates[:, :H3]) + 1.0)   # contiguous [i | f | o]
        gg = jnp.tanh(gates[:, H3:])                       # g
        c_new = sg[:, H:H2] * c + sg[:, :H] * gg
        h_new = sg[:, H2:H3] * jnp.tanh(c_new)
        return h_new, c_new

    zeros = jnp.zeros((Bp, H), jnp.float32)
    h_f, c_f = zeros, zeros
    h_b, c_b = zeros, zeros

    hs_f = [None] * S
    hs_b = [None] * S

    # Statically unrolled recurrence; backward direction uses reversed static
    # time indices (no reversed copies of x or outputs are materialized).
    for t in range(S):
        rt = S - 1 - t
        # One fused recurrent dot for BOTH directions: (2Bp, H) @ (H, 8H).
        hcat = jnp.concatenate([h_f, h_b], axis=0)                       # (2Bp, H)
        rec = jnp.dot(hcat, whh, preferred_element_type=jnp.float32)     # (2Bp, 8H)
        gates_f = proj[t * Bp:(t + 1) * Bp, :H4] + rec[:Bp, :H4]
        gates_b = proj[rt * Bp:(rt + 1) * Bp, H4:] + rec[Bp:, H4:]
        h_f, c_f = gate_math(gates_f, c_f)
        h_b, c_b = gate_math(gates_b, c_b)
        hs_f[t] = h_f          # output at time t     (forward)
        hs_b[rt] = h_b         # output at time S-1-t (backward)

    # Assemble the (S*Bp, 2H) token slab in registers — no VMEM scratch,
    # no masked partial stores, no store->load serialization before the MLP.
    h2d = jnp.concatenate(
        [jnp.concatenate([hs_f[t], hs_b[t]], axis=1) for t in range(S)], axis=0)

    # Fused MLP head on the (S*Bp, 2H) token slab.
    # TODO(synk): Dropout(0.5) is stochastic in train mode; eval-mode identity used.
    z = jnp.dot(h2d, w2_ref[...], preferred_element_type=jnp.float32) + b2_ref[...]
    z = jnp.maximum(z, LEAKY_SLOPE * z)
    z = jnp.dot(z, w3_ref[...], preferred_element_type=jnp.float32) + b3_ref[...]
    z = jnp.maximum(z, LEAKY_SLOPE * z)
    out_ref[...] = jnp.dot(z, w4_ref[...],
                           preferred_element_type=jnp.float32) + b4_ref[...]


# -----------------------------------------------------------------------------
# Wrapper: pad batch to 8 sublanes, call the fused kernel, slice padding off.
# -----------------------------------------------------------------------------
@jax.jit
def sentiment_forward(x, packed):
    S, B, I = x.shape
    H = packed["whh"].shape[0]
    Bp = _round_up(max(B, SUBLANE), SUBLANE)
    OUTP = packed["w4"].shape[1]

    x_pad = jnp.pad(x.astype(jnp.float32), ((0, 0), (0, Bp - B), (0, 0)))
    x2d = x_pad.reshape(S * Bp, I)

    kernel = functools.partial(_fused_kernel, S=S, Bp=Bp, H=H)
    y_pad = pl.pallas_call(
        kernel,
        out_shape=jax.ShapeDtypeStruct((S * Bp, OUTP), jnp.float32),
    )(x2d, packed["wih"], packed["bih"], packed["whh"],
      packed["w2"], packed["b2"], packed["w3"], packed["b3"],
      packed["w4"], packed["b4"])

    # Drop batch padding and the lane padding of the logits (2 real classes).
    return y_pad.reshape(S, Bp, OUTP)[:, :B, :2]


# -----------------------------------------------------------------------------
# Parameters: PyTorch-native layout init + one-time repacking for the kernel.
# -----------------------------------------------------------------------------
def init_torch_params(key, input_size, hidden_size):
    """Random params in PyTorch nn.LSTM / nn.Linear native layout."""
    H, I = hidden_size, input_size

    def u(k, shape, bound):
        return jax.random.uniform(k, shape, jnp.float32, -bound, bound)

    ks = jax.random.split(key, 14)
    kl = 1.0 / jnp.sqrt(H)
    return {
        # LSTM forward direction (gate row order i, f, g, o)
        "w_ih_f": u(ks[0], (4 * H, I), kl), "w_hh_f": u(ks[1], (4 * H, H), kl),
        "b_ih_f": u(ks[2], (4 * H,), kl),   "b_hh_f": u(ks[3], (4 * H,), kl),
        # LSTM reverse direction
        "w_ih_b": u(ks[4], (4 * H, I), kl), "w_hh_b": u(ks[5], (4 * H, H), kl),
        "b_ih_b": u(ks[6], (4 * H,), kl),   "b_hh_b": u(ks[7], (4 * H,), kl),
        # MLP head (nn.Linear weight layout: (out, in))
        "w2": u(ks[8], (500, 2 * H), 1.0 / jnp.sqrt(2 * H)),
        "b2": u(ks[9], (500,), 1.0 / jnp.sqrt(2 * H)),
        "w3": u(ks[10], (100, 500), 1.0 / jnp.sqrt(500)),
        "b3": u(ks[11], (100,), 1.0 / jnp.sqrt(500)),
        "w4": u(ks[12], (2, 100), 1.0 / jnp.sqrt(100)),
        "b4": u(ks[13], (2,), 1.0 / jnp.sqrt(100)),
    }


def pack_params(p, hidden_size):
    """Repack PyTorch-layout params into the kernel layout (done once, offline)."""
    H = hidden_size

    def reorder(w_t):  # (in, 4H) columns [i,f,g,o] -> [i,f,o,g]
        return jnp.concatenate(
            [w_t[:, 0:H], w_t[:, H:2 * H], w_t[:, 3 * H:4 * H], w_t[:, 2 * H:3 * H]],
            axis=1)

    def pad2(w, rows, cols):
        return jnp.pad(w, ((0, rows - w.shape[0]), (0, cols - w.shape[1])))

    wih_f = reorder(p["w_ih_f"].T)                       # (I, 4H)
    wih_b = reorder(p["w_ih_b"].T)
    bih_f = reorder((p["b_ih_f"] + p["b_hh_f"])[None, :])
    bih_b = reorder((p["b_ih_b"] + p["b_hh_b"])[None, :])

    d500 = _round_up(500, LANE)   # 512
    d100 = _round_up(100, LANE)   # 128
    dout = LANE                   # lane-dense logits slab

    return {
        "wih": jnp.concatenate([wih_f, wih_b], axis=1),                  # (I, 8H)
        "bih": jnp.concatenate([bih_f, bih_b], axis=1),                  # (1, 8H)
        # packed recurrent weight for the fused per-step dot: [whh_f | whh_b]
        "whh": jnp.concatenate(
            [reorder(p["w_hh_f"].T), reorder(p["w_hh_b"].T)], axis=1),   # (H, 8H)
        "w2": pad2(p["w2"].T, 2 * H, d500),                              # (2H, 512)
        "b2": pad2(p["b2"][None, :], 1, d500),
        "w3": pad2(p["w3"].T, d500, d100),                               # (512, 128)
        "b3": pad2(p["b3"][None, :], 1, d100),
        "w4": pad2(p["w4"].T, d100, dout),                               # (128, 128)
        "b4": pad2(p["b4"][None, :], 1, dout),
    }


# -----------------------------------------------------------------------------
# Pure-JAX reference of the PyTorch module (eval-mode dropout) for validation.
# -----------------------------------------------------------------------------
def reference_forward(x, p, hidden_size):
    H = hidden_size
    S, B, _ = x.shape
    dot = functools.partial(jnp.dot, precision=jax.lax.Precision.HIGHEST)

    def run_dir(xs, w_ih, w_hh, b_ih, b_hh):
        h = jnp.zeros((B, H), jnp.float32)
        c = jnp.zeros((B, H), jnp.float32)
        outs = []
        for t in range(xs.shape[0]):
            g = dot(xs[t], w_ih.T) + b_ih + dot(h, w_hh.T) + b_hh
            i = jax.nn.sigmoid(g[:, 0:H])
            f = jax.nn.sigmoid(g[:, H:2 * H])
            gg = jnp.tanh(g[:, 2 * H:3 * H])
            o = jax.nn.sigmoid(g[:, 3 * H:4 * H])
            c = f * c + i * gg
            h = o * jnp.tanh(c)
            outs.append(h)
        return jnp.stack(outs)

    out_f = run_dir(x, p["w_ih_f"], p["w_hh_f"], p["b_ih_f"], p["b_hh_f"])
    out_b = run_dir(x[::-1], p["w_ih_b"], p["w_hh_b"], p["b_ih_b"], p["b_hh_b"])[::-1]
    h = jnp.concatenate([out_f, out_b], axis=-1).reshape(S * B, 2 * H)

    def leaky(v):
        return jnp.where(v > 0, v, LEAKY_SLOPE * v)

    h = leaky(dot(h, p["w2"].T) + p["b2"])
    h = leaky(dot(h, p["w3"].T) + p["b3"])
    h = dot(h, p["w4"].T) + p["b4"]
    return h.reshape(S, B, 2)


if __name__ == "__main__":
    seq_len, batch, input_size, hidden_size = 8, 2, 32, 32

    key = jax.random.PRNGKey(0)
    k_x, k_p = jax.random.split(key)
    x = jax.random.normal(k_x, (seq_len, batch, input_size), jnp.float32)

    torch_params = init_torch_params(k_p, input_size, hidden_size)
    packed = pack_params(torch_params, hidden_size)

    y = sentiment_forward(x, packed)
    jax.block_until_ready(y)

    assert y.shape == (seq_len, batch, 2)
    assert bool(jnp.all(jnp.isfinite(y)))

    # Numerical check vs. the pure-JAX reference (tolerance covers MXU precision).
    y_ref = reference_forward(x, torch_params, hidden_size)
    assert bool(jnp.max(jnp.abs(y - y_ref)) < 2e-2)

    print("KERNEL_OK")
</pallas_src>

<mosaic_0001>
module attributes {stable_mosaic.version = 11 : i64} {
  func.func @_fused_kernel(%arg0: memref<64x32xf32, #tpu.memory_space<vmem>>, %arg1: memref<32x256xf32, #tpu.memory_space<vmem>>, %arg2: memref<1x256xf32, #tpu.memory_space<vmem>>, %arg3: memref<32x256xf32, #tpu.memory_space<vmem>>, %arg4: memref<64x512xf32, #tpu.memory_space<vmem>>, %arg5: memref<1x512xf32, #tpu.memory_space<vmem>>, %arg6: memref<512x128xf32, #tpu.memory_space<vmem>>, %arg7: memref<1x128xf32, #tpu.memory_space<vmem>>, %arg8: memref<128x128xf32, #tpu.memory_space<vmem>>, %arg9: memref<1x128xf32, #tpu.memory_space<vmem>>, %arg10: memref<64x128xf32, #tpu.memory_space<vmem>>) attributes {dimension_semantics = [], scalar_prefetch = 0 : i64, scratch_operands = 0 : i64, tpu.core_type = #tpu.core_type<tc>} {
    %c0 = arith.constant 0 : index
    %c0_0 = arith.constant 0 : index
    %0 = vector.load %arg0[%c0, %c0_0] : memref<64x32xf32, #tpu.memory_space<vmem>>, vector<64x32xf32>
    %c0_1 = arith.constant 0 : index
    %c0_2 = arith.constant 0 : index
    %1 = vector.load %arg1[%c0_1, %c0_2] : memref<32x256xf32, #tpu.memory_space<vmem>>, vector<32x256xf32>
    %cst = arith.constant dense<0.000000e+00> : vector<64x256xf32>
    %2 = tpu.matmul %0, %1, %cst {dimension_numbers = #tpu.dot_dimension_numbers<[1], [0], [0], [1], [0, 0, 1, 1], [], []>} : vector<64x32xf32>, vector<32x256xf32>, vector<64x256xf32> -> vector<64x256xf32>
    %c0_3 = arith.constant 0 : index
    %c0_4 = arith.constant 0 : index
    %3 = vector.load %arg2[%c0_3, %c0_4] : memref<1x256xf32, #tpu.memory_space<vmem>>, vector<1x256xf32>
    %4 = vector.broadcast %3 : vector<1x256xf32> to vector<64x256xf32>
    %5 = arith.addf %2, %4 : vector<64x256xf32>
    %c0_5 = arith.constant 0 : index
    %c0_6 = arith.constant 0 : index
    %6 = vector.load %arg3[%c0_5, %c0_6] : memref<32x256xf32, #tpu.memory_space<vmem>>, vector<32x256xf32>
    %cst_7 = arith.constant 0.000000e+00 : f32
    %7 = vector.broadcast %cst_7 : f32 to vector<8x32xf32>
    %8 = tpu.concatenate %7, %7 in 0 : vector<8x32xf32>, vector<8x32xf32> -> vector<16x32xf32>
    %cst_8 = arith.constant dense<0.000000e+00> : vector<16x256xf32>
    %9 = tpu.matmul %8, %6, %cst_8 {dimension_numbers = #tpu.dot_dimension_numbers<[1], [0], [0], [1], [0, 0, 1, 1], [], []>} : vector<16x32xf32>, vector<32x256xf32>, vector<16x256xf32> -> vector<16x256xf32>
    %10 = vector.extract_strided_slice %5 {offsets = [0, 0], sizes = [8, 128], strides = [1, 1]} : vector<64x256xf32> to vector<8x128xf32>
    %11 = vector.extract_strided_slice %9 {offsets = [0, 0], sizes = [8, 128], strides = [1, 1]} : vector<16x256xf32> to vector<8x128xf32>
    %12 = arith.addf %10, %11 : vector<8x128xf32>
    %13 = vector.extract_strided_slice %5 {offsets = [56, 128], sizes = [8, 128], strides = [1, 1]} : vector<64x256xf32> to vector<8x128xf32>
    %14 = vector.extract_strided_slice %9 {offsets = [8, 128], sizes = [8, 128], strides = [1, 1]} : vector<16x256xf32> to vector<8x128xf32>
    %15 = arith.addf %13, %14 : vector<8x128xf32>
    %16 = vector.extract_strided_slice %12 {offsets = [0, 0], sizes = [8, 96], strides = [1, 1]} : vector<8x128xf32> to vector<8x96xf32>
    %cst_9 = arith.constant 5.000000e-01 : f32
    %17 = vector.broadcast %cst_9 : f32 to vector<8x96xf32>
    %18 = arith.mulf %17, %16 : vector<8x96xf32>
    %19 = math.tanh %18 : vector<8x96xf32>
    %cst_10 = arith.constant 1.000000e+00 : f32
    %20 = vector.broadcast %cst_10 : f32 to vector<8x96xf32>
    %21 = arith.addf %19, %20 : vector<8x96xf32>
    %cst_11 = arith.constant 5.000000e-01 : f32
    %22 = vector.broadcast %cst_11 : f32 to vector<8x96xf32>
    %23 = arith.mulf %22, %21 : vector<8x96xf32>
    %24 = vector.extract_strided_slice %12 {offsets = [0, 96], sizes = [8, 32], strides = [1, 1]} : vector<8x128xf32> to vector<8x32xf32>
    %25 = math.tanh %24 : vector<8x32xf32>
    %26 = vector.extract_strided_slice %23 {offsets = [0, 32], sizes = [8, 32], strides = [1, 1]} : vector<8x96xf32> to vector<8x32xf32>
    %27 = arith.mulf %26, %7 : vector<8x32xf32>
    %28 = vector.extract_strided_slice %23 {offsets = [0, 0], sizes = [8, 32], strides = [1, 1]} : vector<8x96xf32> to vector<8x32xf32>
    %29 = arith.mulf %28, %25 : vector<8x32xf32>
    %30 = arith.addf %27, %29 : vector<8x32xf32>
    %31 = vector.extract_strided_slice %23 {offsets = [0, 64], sizes = [8, 32], strides = [1, 1]} : vector<8x96xf32> to vector<8x32xf32>
    %32 = math.tanh %30 : vector<8x32xf32>
    %33 = arith.mulf %31, %32 : vector<8x32xf32>
    %34 = vector.extract_strided_slice %15 {offsets = [0, 0], sizes = [8, 96], strides = [1, 1]} : vector<8x128xf32> to vector<8x96xf32>
    %cst_12 = arith.constant 5.000000e-01 : f32
    %35 = vector.broadcast %cst_12 : f32 to vector<8x96xf32>
    %36 = arith.mulf %35, %34 : vector<8x96xf32>
    %37 = math.tanh %36 : vector<8x96xf32>
    %cst_13 = arith.constant 1.000000e+00 : f32
    %38 = vector.broadcast %cst_13 : f32 to vector<8x96xf32>
    %39 = arith.addf %37, %38 : vector<8x96xf32>
    %cst_14 = arith.constant 5.000000e-01 : f32
    %40 = vector.broadcast %cst_14 : f32 to vector<8x96xf32>
    %41 = arith.mulf %40, %39 : vector<8x96xf32>
    %42 = vector.extract_strided_slice %15 {offsets = [0, 96], sizes = [8, 32], strides = [1, 1]} : vector<8x128xf32> to vector<8x32xf32>
    %43 = math.tanh %42 : vector<8x32xf32>
    %44 = vector.extract_strided_slice %41 {offsets = [0, 32], sizes = [8, 32], strides = [1, 1]} : vector<8x96xf32> to vector<8x32xf32>
    %45 = arith.mulf %44, %7 : vector<8x32xf32>
    %46 = vector.extract_strided_slice %41 {offsets = [0, 0], sizes = [8, 32], strides = [1, 1]} : vector<8x96xf32> to vector<8x32xf32>
    %47 = arith.mulf %46, %43 : vector<8x32xf32>
    %48 = arith.addf %45, %47 : vector<8x32xf32>
    %49 = vector.extract_strided_slice %41 {offsets = [0, 64], sizes = [8, 32], strides = [1, 1]} : vector<8x96xf32> to vector<8x32xf32>
    %50 = math.tanh %48 : vector<8x32xf32>
    %51 = arith.mulf %49, %50 : vector<8x32xf32>
    %52 = tpu.concatenate %33, %51 in 0 : vector<8x32xf32>, vector<8x32xf32> -> vector<16x32xf32>
    %cst_15 = arith.constant dense<0.000000e+00> : vector<16x256xf32>
    %53 = tpu.matmul %52, %6, %cst_15 {dimension_numbers = #tpu.dot_dimension_numbers<[1], [0], [0], [1], [0, 0, 1, 1], [], []>} : vector<16x32xf32>, vector<32x256xf32>, vector<16x256xf32> -> vector<16x256xf32>
    %54 = vector.extract_strided_slice %5 {offsets = [8, 0], sizes = [8, 128], strides = [1, 1]} : vector<64x256xf32> to vector<8x128xf32>
    %55 = vector.extract_strided_slice %53 {offsets = [0, 0], sizes = [8, 128], strides = [1, 1]} : vector<16x256xf32> to vector<8x128xf32>
    %56 = arith.addf %54, %55 : vector<8x128xf32>
    %57 = vector.extract_strided_slice %5 {offsets = [48, 128], sizes = [8, 128], strides = [1, 1]} : vector<64x256xf32> to vector<8x128xf32>
    %58 = vector.extract_strided_slice %53 {offsets = [8, 128], sizes = [8, 128], strides = [1, 1]} : vector<16x256xf32> to vector<8x128xf32>
    %59 = arith.addf %57, %58 : vector<8x128xf32>
    %60 = vector.extract_strided_slice %56 {offsets = [0, 0], sizes = [8, 96], strides = [1, 1]} : vector<8x128xf32> to vector<8x96xf32>
    %cst_16 = arith.constant 5.000000e-01 : f32
    %61 = vector.broadcast %cst_16 : f32 to vector<8x96xf32>
    %62 = arith.mulf %61, %60 : vector<8x96xf32>
    %63 = math.tanh %62 : vector<8x96xf32>
    %cst_17 = arith.constant 1.000000e+00 : f32
    %64 = vector.broadcast %cst_17 : f32 to vector<8x96xf32>
    %65 = arith.addf %63, %64 : vector<8x96xf32>
    %cst_18 = arith.constant 5.000000e-01 : f32
    %66 = vector.broadcast %cst_18 : f32 to vector<8x96xf32>
    %67 = arith.mulf %66, %65 : vector<8x96xf32>
    %68 = vector.extract_strided_slice %56 {offsets = [0, 96], sizes = [8, 32], strides = [1, 1]} : vector<8x128xf32> to vector<8x32xf32>
    %69 = math.tanh %68 : vector<8x32xf32>
    %70 = vector.extract_strided_slice %67 {offsets = [0, 32], sizes = [8, 32], strides = [1, 1]} : vector<8x96xf32> to vector<8x32xf32>
    %71 = arith.mulf %70, %30 : vector<8x32xf32>
    %72 = vector.extract_strided_slice %67 {offsets = [0, 0], sizes = [8, 32], strides = [1, 1]} : vector<8x96xf32> to vector<8x32xf32>
    %73 = arith.mulf %72, %69 : vector<8x32xf32>
    %74 = arith.addf %71, %73 : vector<8x32xf32>
    %75 = vector.extract_strided_slice %67 {offsets = [0, 64], sizes = [8, 32], strides = [1, 1]} : vector<8x96xf32> to vector<8x32xf32>
    %76 = math.tanh %74 : vector<8x32xf32>
    %77 = arith.mulf %75, %76 : vector<8x32xf32>
    %78 = vector.extract_strided_slice %59 {offsets = [0, 0], sizes = [8, 96], strides = [1, 1]} : vector<8x128xf32> to vector<8x96xf32>
    %cst_19 = arith.constant 5.000000e-01 : f32
    %79 = vector.broadcast %cst_19 : f32 to vector<8x96xf32>
    %80 = arith.mulf %79, %78 : vector<8x96xf32>
    %81 = math.tanh %80 : vector<8x96xf32>
    %cst_20 = arith.constant 1.000000e+00 : f32
    %82 = vector.broadcast %cst_20 : f32 to vector<8x96xf32>
    %83 = arith.addf %81, %82 : vector<8x96xf32>
    %cst_21 = arith.constant 5.000000e-01 : f32
    %84 = vector.broadcast %cst_21 : f32 to vector<8x96xf32>
    %85 = arith.mulf %84, %83 : vector<8x96xf32>
    %86 = vector.extract_strided_slice %59 {offsets = [0, 96], sizes = [8, 32], strides = [1, 1]} : vector<8x128xf32> to vector<8x32xf32>
    %87 = math.tanh %86 : vector<8x32xf32>
    %88 = vector.extract_strided_slice %85 {offsets = [0, 32], sizes = [8, 32], strides = [1, 1]} : vector<8x96xf32> to vector<8x32xf32>
    %89 = arith.mulf %88, %48 : vector<8x32xf32>
    %90 = vector.extract_strided_slice %85 {offsets = [0, 0], sizes = [8, 32], strides = [1, 1]} : vector<8x96xf32> to vector<8x32xf32>
    %91 = arith.mulf %90, %87 : vector<8x32xf32>
    %92 = arith.addf %89, %91 : vector<8x32xf32>
    %93 = vector.extract_strided_slice %85 {offsets = [0, 64], sizes = [8, 32], strides = [1, 1]} : vector<8x96xf32> to vector<8x32xf32>
    %94 = math.tanh %92 : vector<8x32xf32>
    %95 = arith.mulf %93, %94 : vector<8x32xf32>
    %96 = tpu.concatenate %77, %95 in 0 : vector<8x32xf32>, vector<8x32xf32> -> vector<16x32xf32>
    %cst_22 = arith.constant dense<0.000000e+00> : vector<16x256xf32>
    %97 = tpu.matmul %96, %6, %cst_22 {dimension_numbers = #tpu.dot_dimension_numbers<[1], [0], [0], [1], [0, 0, 1, 1], [], []>} : vector<16x32xf32>, vector<32x256xf32>, vector<16x256xf32> -> vector<16x256xf32>
    %98 = vector.extract_strided_slice %5 {offsets = [16, 0], sizes = [8, 128], strides = [1, 1]} : vector<64x256xf32> to vector<8x128xf32>
    %99 = vector.extract_strided_slice %97 {offsets = [0, 0], sizes = [8, 128], strides = [1, 1]} : vector<16x256xf32> to vector<8x128xf32>
    %100 = arith.addf %98, %99 : vector<8x128xf32>
    %101 = vector.extract_strided_slice %5 {offsets = [40, 128], sizes = [8, 128], strides = [1, 1]} : vector<64x256xf32> to vector<8x128xf32>
    %102 = vector.extract_strided_slice %97 {offsets = [8, 128], sizes = [8, 128], strides = [1, 1]} : vector<16x256xf32> to vector<8x128xf32>
    %103 = arith.addf %101, %102 : vector<8x128xf32>
    %104 = vector.extract_strided_slice %100 {offsets = [0, 0], sizes = [8, 96], strides = [1, 1]} : vector<8x128xf32> to vector<8x96xf32>
    %cst_23 = arith.constant 5.000000e-01 : f32
    %105 = vector.broadcast %cst_23 : f32 to vector<8x96xf32>
    %106 = arith.mulf %105, %104 : vector<8x96xf32>
    %107 = math.tanh %106 : vector<8x96xf32>
    %cst_24 = arith.constant 1.000000e+00 : f32
    %108 = vector.broadcast %cst_24 : f32 to vector<8x96xf32>
    %109 = arith.addf %107, %108 : vector<8x96xf32>
    %cst_25 = arith.constant 5.000000e-01 : f32
    %110 = vector.broadcast %cst_25 : f32 to vector<8x96xf32>
    %111 = arith.mulf %110, %109 : vector<8x96xf32>
    %112 = vector.extract_strided_slice %100 {offsets = [0, 96], sizes = [8, 32], strides = [1, 1]} : vector<8x128xf32> to vector<8x32xf32>
    %113 = math.tanh %112 : vector<8x32xf32>
    %114 = vector.extract_strided_slice %111 {offsets = [0, 32], sizes = [8, 32], strides = [1, 1]} : vector<8x96xf32> to vector<8x32xf32>
    %115 = arith.mulf %114, %74 : vector<8x32xf32>
    %116 = vector.extract_strided_slice %111 {offsets = [0, 0], sizes = [8, 32], strides = [1, 1]} : vector<8x96xf32> to vector<8x32xf32>
    %117 = arith.mulf %116, %113 : vector<8x32xf32>
    %118 = arith.addf %115, %117 : vector<8x32xf32>
    %119 = vector.extract_strided_slice %111 {offsets = [0, 64], sizes = [8, 32], strides = [1, 1]} : vector<8x96xf32> to vector<8x32xf32>
    %120 = math.tanh %118 : vector<8x32xf32>
    %121 = arith.mulf %119, %120 : vector<8x32xf32>
    %122 = vector.extract_strided_slice %103 {offsets = [0, 0], sizes = [8, 96], strides = [1, 1]} : vector<8x128xf32> to vector<8x96xf32>
    %cst_26 = arith.constant 5.000000e-01 : f32
    %123 = vector.broadcast %cst_26 : f32 to vector<8x96xf32>
    %124 = arith.mulf %123, %122 : vector<8x96xf32>
    %125 = math.tanh %124 : vector<8x96xf32>
    %cst_27 = arith.constant 1.000000e+00 : f32
    %126 = vector.broadcast %cst_27 : f32 to vector<8x96xf32>
    %127 = arith.addf %125, %126 : vector<8x96xf32>
    %cst_28 = arith.constant 5.000000e-01 : f32
    %128 = vector.broadcast %cst_28 : f32 to vector<8x96xf32>
    %129 = arith.mulf %128, %127 : vector<8x96xf32>
    %130 = vector.extract_strided_slice %103 {offsets = [0, 96], sizes = [8, 32], strides = [1, 1]} : vector<8x128xf32> to vector<8x32xf32>
    %131 = math.tanh %130 : vector<8x32xf32>
    %132 = vector.extract_strided_slice %129 {offsets = [0, 32], sizes = [8, 32], strides = [1, 1]} : vector<8x96xf32> to vector<8x32xf32>
    %133 = arith.mulf %132, %92 : vector<8x32xf32>
    %134 = vector.extract_strided_slice %129 {offsets = [0, 0], sizes = [8, 32], strides = [1, 1]} : vector<8x96xf32> to vector<8x32xf32>
    %135 = arith.mulf %134, %131 : vector<8x32xf32>
    %136 = arith.addf %133, %135 : vector<8x32xf32>
    %137 = vector.extract_strided_slice %129 {offsets = [0, 64], sizes = [8, 32], strides = [1, 1]} : vector<8x96xf32> to vector<8x32xf32>
    %138 = math.tanh %136 : vector<8x32xf32>
    %139 = arith.mulf %137, %138 : vector<8x32xf32>
    %140 = tpu.concatenate %121, %139 in 0 : vector<8x32xf32>, vector<8x32xf32> -> vector<16x32xf32>
    %cst_29 = arith.constant dense<0.000000e+00> : vector<16x256xf32>
    %141 = tpu.matmul %140, %6, %cst_29 {dimension_numbers = #tpu.dot_dimension_numbers<[1], [0], [0], [1], [0, 0, 1, 1], [], []>} : vector<16x32xf32>, vector<32x256xf32>, vector<16x256xf32> -> vector<16x256xf32>
    %142 = vector.extract_strided_slice %5 {offsets = [24, 0], sizes = [8, 128], strides = [1, 1]} : vector<64x256xf32> to vector<8x128xf32>
    %143 = vector.extract_strided_slice %141 {offsets = [0, 0], sizes = [8, 128], strides = [1, 1]} : vector<16x256xf32> to vector<8x128xf32>
    %144 = arith.addf %142, %143 : vector<8x128xf32>
    %145 = vector.extract_strided_slice %5 {offsets = [32, 128], sizes = [8, 128], strides = [1, 1]} : vector<64x256xf32> to vector<8x128xf32>
    %146 = vector.extract_strided_slice %141 {offsets = [8, 128], sizes = [8, 128], strides = [1, 1]} : vector<16x256xf32> to vector<8x128xf32>
    %147 = arith.addf %145, %146 : vector<8x128xf32>
    %148 = vector.extract_strided_slice %144 {offsets = [0, 0], sizes = [8, 96], strides = [1, 1]} : vector<8x128xf32> to vector<8x96xf32>
    %cst_30 = arith.constant 5.000000e-01 : f32
    %149 = vector.broadcast %cst_30 : f32 to vector<8x96xf32>
    %150 = arith.mulf %149, %148 : vector<8x96xf32>
    %151 = math.tanh %150 : vector<8x96xf32>
    %cst_31 = arith.constant 1.000000e+00 : f32
    %152 = vector.broadcast %cst_31 : f32 to vector<8x96xf32>
    %153 = arith.addf %151, %152 : vector<8x96xf32>
    %cst_32 = arith.constant 5.000000e-01 : f32
    %154 = vector.broadcast %cst_32 : f32 to vector<8x96xf32>
    %155 = arith.mulf %154, %153 : vector<8x96xf32>
    %156 = vector.extract_strided_slice %144 {offsets = [0, 96], sizes = [8, 32], strides = [1, 1]} : vector<8x128xf32> to vector<8x32xf32>
    %157 = math.tanh %156 : vector<8x32xf32>
    %158 = vector.extract_strided_slice %155 {offsets = [0, 32], sizes = [8, 32], strides = [1, 1]} : vector<8x96xf32> to vector<8x32xf32>
    %159 = arith.mulf %158, %118 : vector<8x32xf32>
    %160 = vector.extract_strided_slice %155 {offsets = [0, 0], sizes = [8, 32], strides = [1, 1]} : vector<8x96xf32> to vector<8x32xf32>
    %161 = arith.mulf %160, %157 : vector<8x32xf32>
    %162 = arith.addf %159, %161 : vector<8x32xf32>
    %163 = vector.extract_strided_slice %155 {offsets = [0, 64], sizes = [8, 32], strides = [1, 1]} : vector<8x96xf32> to vector<8x32xf32>
    %164 = math.tanh %162 : vector<8x32xf32>
    %165 = arith.mulf %163, %164 : vector<8x32xf32>
    %166 = vector.extract_strided_slice %147 {offsets = [0, 0], sizes = [8, 96], strides = [1, 1]} : vector<8x128xf32> to vector<8x96xf32>
    %cst_33 = arith.constant 5.000000e-01 : f32
    %167 = vector.broadcast %cst_33 : f32 to vector<8x96xf32>
    %168 = arith.mulf %167, %166 : vector<8x96xf32>
    %169 = math.tanh %168 : vector<8x96xf32>
    %cst_34 = arith.constant 1.000000e+00 : f32
    %170 = vector.broadcast %cst_34 : f32 to vector<8x96xf32>
    %171 = arith.addf %169, %170 : vector<8x96xf32>
    %cst_35 = arith.constant 5.000000e-01 : f32
    %172 = vector.broadcast %cst_35 : f32 to vector<8x96xf32>
    %173 = arith.mulf %172, %171 : vector<8x96xf32>
    %174 = vector.extract_strided_slice %147 {offsets = [0, 96], sizes = [8, 32], strides = [1, 1]} : vector<8x128xf32> to vector<8x32xf32>
    %175 = math.tanh %174 : vector<8x32xf32>
    %176 = vector.extract_strided_slice %173 {offsets = [0, 32], sizes = [8, 32], strides = [1, 1]} : vector<8x96xf32> to vector<8x32xf32>
    %177 = arith.mulf %176, %136 : vector<8x32xf32>
    %178 = vector.extract_strided_slice %173 {offsets = [0, 0], sizes = [8, 32], strides = [1, 1]} : vector<8x96xf32> to vector<8x32xf32>
    %179 = arith.mulf %178, %175 : vector<8x32xf32>
    %180 = arith.addf %177, %179 : vector<8x32xf32>
    %181 = vector.extract_strided_slice %173 {offsets = [0, 64], sizes = [8, 32], strides = [1, 1]} : vector<8x96xf32> to vector<8x32xf32>
    %182 = math.tanh %180 : vector<8x32xf32>
    %183 = arith.mulf %181, %182 : vector<8x32xf32>
    %184 = tpu.concatenate %165, %183 in 0 : vector<8x32xf32>, vector<8x32xf32> -> vector<16x32xf32>
    %cst_36 = arith.constant dense<0.000000e+00> : vector<16x256xf32>
    %185 = tpu.matmul %184, %6, %cst_36 {dimension_numbers = #tpu.dot_dimension_numbers<[1], [0], [0], [1], [0, 0, 1, 1], [], []>} : vector<16x32xf32>, vector<32x256xf32>, vector<16x256xf32> -> vector<16x256xf32>
    %186 = vector.extract_strided_slice %5 {offsets = [32, 0], sizes = [8, 128], strides = [1, 1]} : vector<64x256xf32> to vector<8x128xf32>
    %187 = vector.extract_strided_slice %185 {offsets = [0, 0], sizes = [8, 128], strides = [1, 1]} : vector<16x256xf32> to vector<8x128xf32>
    %188 = arith.addf %186, %187 : vector<8x128xf32>
    %189 = vector.extract_strided_slice %5 {offsets = [24, 128], sizes = [8, 128], strides = [1, 1]} : vector<64x256xf32> to vector<8x128xf32>
    %190 = vector.extract_strided_slice %185 {offsets = [8, 128], sizes = [8, 128], strides = [1, 1]} : vector<16x256xf32> to vector<8x128xf32>
    %191 = arith.addf %189, %190 : vector<8x128xf32>
    %192 = vector.extract_strided_slice %188 {offsets = [0, 0], sizes = [8, 96], strides = [1, 1]} : vector<8x128xf32> to vector<8x96xf32>
    %cst_37 = arith.constant 5.000000e-01 : f32
    %193 = vector.broadcast %cst_37 : f32 to vector<8x96xf32>
    %194 = arith.mulf %193, %192 : vector<8x96xf32>
    %195 = math.tanh %194 : vector<8x96xf32>
    %cst_38 = arith.constant 1.000000e+00 : f32
    %196 = vector.broadcast %cst_38 : f32 to vector<8x96xf32>
    %197 = arith.addf %195, %196 : vector<8x96xf32>
    %cst_39 = arith.constant 5.000000e-01 : f32
    %198 = vector.broadcast %cst_39 : f32 to vector<8x96xf32>
    %199 = arith.mulf %198, %197 : vector<8x96xf32>
    %200 = vector.extract_strided_slice %188 {offsets = [0, 96], sizes = [8, 32], strides = [1, 1]} : vector<8x128xf32> to vector<8x32xf32>
    %201 = math.tanh %200 : vector<8x32xf32>
    %202 = vector.extract_strided_slice %199 {offsets = [0, 32], sizes = [8, 32], strides = [1, 1]} : vector<8x96xf32> to vector<8x32xf32>
    %203 = arith.mulf %202, %162 : vector<8x32xf32>
    %204 = vector.extract_strided_slice %199 {offsets = [0, 0], sizes = [8, 32], strides = [1, 1]} : vector<8x96xf32> to vector<8x32xf32>
    %205 = arith.mulf %204, %201 : vector<8x32xf32>
    %206 = arith.addf %203, %205 : vector<8x32xf32>
    %207 = vector.extract_strided_slice %199 {offsets = [0, 64], sizes = [8, 32], strides = [1, 1]} : vector<8x96xf32> to vector<8x32xf32>
    %208 = math.tanh %206 : vector<8x32xf32>
    %209 = arith.mulf %207, %208 : vector<8x32xf32>
    %210 = vector.extract_strided_slice %191 {offsets = [0, 0], sizes = [8, 96], strides = [1, 1]} : vector<8x128xf32> to vector<8x96xf32>
    %cst_40 = arith.constant 5.000000e-01 : f32
    %211 = vector.broadcast %cst_40 : f32 to vector<8x96xf32>
    %212 = arith.mulf %211, %210 : vector<8x96xf32>
    %213 = math.tanh %212 : vector<8x96xf32>
    %cst_41 = arith.constant 1.000000e+00 : f32
    %214 = vector.broadcast %cst_41 : f32 to vector<8x96xf32>
    %215 = arith.addf %213, %214 : vector<8x96xf32>
    %cst_42 = arith.constant 5.000000e-01 : f32
    %216 = vector.broadcast %cst_42 : f32 to vector<8x96xf32>
    %217 = arith.mulf %216, %215 : vector<8x96xf32>
    %218 = vector.extract_strided_slice %191 {offsets = [0, 96], sizes = [8, 32], strides = [1, 1]} : vector<8x128xf32> to vector<8x32xf32>
    %219 = math.tanh %218 : vector<8x32xf32>
    %220 = vector.extract_strided_slice %217 {offsets = [0, 32], sizes = [8, 32], strides = [1, 1]} : vector<8x96xf32> to vector<8x32xf32>
    %221 = arith.mulf %220, %180 : vector<8x32xf32>
    %222 = vector.extract_strided_slice %217 {offsets = [0, 0], sizes = [8, 32], strides = [1, 1]} : vector<8x96xf32> to vector<8x32xf32>
    %223 = arith.mulf %222, %219 : vector<8x32xf32>
    %224 = arith.addf %221, %223 : vector<8x32xf32>
    %225 = vector.extract_strided_slice %217 {offsets = [0, 64], sizes = [8, 32], strides = [1, 1]} : vector<8x96xf32> to vector<8x32xf32>
    %226 = math.tanh %224 : vector<8x32xf32>
    %227 = arith.mulf %225, %226 : vector<8x32xf32>
    %228 = tpu.concatenate %209, %227 in 0 : vector<8x32xf32>, vector<8x32xf32> -> vector<16x32xf32>
    %cst_43 = arith.constant dense<0.000000e+00> : vector<16x256xf32>
    %229 = tpu.matmul %228, %6, %cst_43 {dimension_numbers = #tpu.dot_dimension_numbers<[1], [0], [0], [1], [0, 0, 1, 1], [], []>} : vector<16x32xf32>, vector<32x256xf32>, vector<16x256xf32> -> vector<16x256xf32>
    %230 = vector.extract_strided_slice %5 {offsets = [40, 0], sizes = [8, 128], strides = [1, 1]} : vector<64x256xf32> to vector<8x128xf32>
    %231 = vector.extract_strided_slice %229 {offsets = [0, 0], sizes = [8, 128], strides = [1, 1]} : vector<16x256xf32> to vector<8x128xf32>
    %232 = arith.addf %230, %231 : vector<8x128xf32>
    %233 = vector.extract_strided_slice %5 {offsets = [16, 128], sizes = [8, 128], strides = [1, 1]} : vector<64x256xf32> to vector<8x128xf32>
    %234 = vector.extract_strided_slice %229 {offsets = [8, 128], sizes = [8, 128], strides = [1, 1]} : vector<16x256xf32> to vector<8x128xf32>
    %235 = arith.addf %233, %234 : vector<8x128xf32>
    %236 = vector.extract_strided_slice %232 {offsets = [0, 0], sizes = [8, 96], strides = [1, 1]} : vector<8x128xf32> to vector<8x96xf32>
    %cst_44 = arith.constant 5.000000e-01 : f32
    %237 = vector.broadcast %cst_44 : f32 to vector<8x96xf32>
    %238 = arith.mulf %237, %236 : vector<8x96xf32>
    %239 = math.tanh %238 : vector<8x96xf32>
    %cst_45 = arith.constant 1.000000e+00 : f32
    %240 = vector.broadcast %cst_45 : f32 to vector<8x96xf32>
    %241 = arith.addf %239, %240 : vector<8x96xf32>
    %cst_46 = arith.constant 5.000000e-01 : f32
    %242 = vector.broadcast %cst_46 : f32 to vector<8x96xf32>
    %243 = arith.mulf %242, %241 : vector<8x96xf32>
    %244 = vector.extract_strided_slice %232 {offsets = [0, 96], sizes = [8, 32], strides = [1, 1]} : vector<8x128xf32> to vector<8x32xf32>
    %245 = math.tanh %244 : vector<8x32xf32>
    %246 = vector.extract_strided_slice %243 {offsets = [0, 32], sizes = [8, 32], strides = [1, 1]} : vector<8x96xf32> to vector<8x32xf32>
    %247 = arith.mulf %246, %206 : vector<8x32xf32>
    %248 = vector.extract_strided_slice %243 {offsets = [0, 0], sizes = [8, 32], strides = [1, 1]} : vector<8x96xf32> to vector<8x32xf32>
    %249 = arith.mulf %248, %245 : vector<8x32xf32>
    %250 = arith.addf %247, %249 : vector<8x32xf32>
    %251 = vector.extract_strided_slice %243 {offsets = [0, 64], sizes = [8, 32], strides = [1, 1]} : vector<8x96xf32> to vector<8x32xf32>
    %252 = math.tanh %250 : vector<8x32xf32>
    %253 = arith.mulf %251, %252 : vector<8x32xf32>
    %254 = vector.extract_strided_slice %235 {offsets = [0, 0], sizes = [8, 96], strides = [1, 1]} : vector<8x128xf32> to vector<8x96xf32>
    %cst_47 = arith.constant 5.000000e-01 : f32
    %255 = vector.broadcast %cst_47 : f32 to vector<8x96xf32>
    %256 = arith.mulf %255, %254 : vector<8x96xf32>
    %257 = math.tanh %256 : vector<8x96xf32>
    %cst_48 = arith.constant 1.000000e+00 : f32
    %258 = vector.broadcast %cst_48 : f32 to vector<8x96xf32>
    %259 = arith.addf %257, %258 : vector<8x96xf32>
    %cst_49 = arith.constant 5.000000e-01 : f32
    %260 = vector.broadcast %cst_49 : f32 to vector<8x96xf32>
    %261 = arith.mulf %260, %259 : vector<8x96xf32>
    %262 = vector.extract_strided_slice %235 {offsets = [0, 96], sizes = [8, 32], strides = [1, 1]} : vector<8x128xf32> to vector<8x32xf32>
    %263 = math.tanh %262 : vector<8x32xf32>
    %264 = vector.extract_strided_slice %261 {offsets = [0, 32], sizes = [8, 32], strides = [1, 1]} : vector<8x96xf32> to vector<8x32xf32>
    %265 = arith.mulf %264, %224 : vector<8x32xf32>
    %266 = vector.extract_strided_slice %261 {offsets = [0, 0], sizes = [8, 32], strides = [1, 1]} : vector<8x96xf32> to vector<8x32xf32>
    %267 = arith.mulf %266, %263 : vector<8x32xf32>
    %268 = arith.addf %265, %267 : vector<8x32xf32>
    %269 = vector.extract_strided_slice %261 {offsets = [0, 64], sizes = [8, 32], strides = [1, 1]} : vector<8x96xf32> to vector<8x32xf32>
    %270 = math.tanh %268 : vector<8x32xf32>
    %271 = arith.mulf %269, %270 : vector<8x32xf32>
    %272 = tpu.concatenate %253, %271 in 0 : vector<8x32xf32>, vector<8x32xf32> -> vector<16x32xf32>
    %cst_50 = arith.constant dense<0.000000e+00> : vector<16x256xf32>
    %273 = tpu.matmul %272, %6, %cst_50 {dimension_numbers = #tpu.dot_dimension_numbers<[1], [0], [0], [1], [0, 0, 1, 1], [], []>} : vector<16x32xf32>, vector<32x256xf32>, vector<16x256xf32> -> vector<16x256xf32>
    %274 = vector.extract_strided_slice %5 {offsets = [48, 0], sizes = [8, 128], strides = [1, 1]} : vector<64x256xf32> to vector<8x128xf32>
    %275 = vector.extract_strided_slice %273 {offsets = [0, 0], sizes = [8, 128], strides = [1, 1]} : vector<16x256xf32> to vector<8x128xf32>
    %276 = arith.addf %274, %275 : vector<8x128xf32>
    %277 = vector.extract_strided_slice %5 {offsets = [8, 128], sizes = [8, 128], strides = [1, 1]} : vector<64x256xf32> to vector<8x128xf32>
    %278 = vector.extract_strided_slice %273 {offsets = [8, 128], sizes = [8, 128], strides = [1, 1]} : vector<16x256xf32> to vector<8x128xf32>
    %279 = arith.addf %277, %278 : vector<8x128xf32>
    %280 = vector.extract_strided_slice %276 {offsets = [0, 0], sizes = [8, 96], strides = [1, 1]} : vector<8x128xf32> to vector<8x96xf32>
    %cst_51 = arith.constant 5.000000e-01 : f32
    %281 = vector.broadcast %cst_51 : f32 to vector<8x96xf32>
    %282 = arith.mulf %281, %280 : vector<8x96xf32>
    %283 = math.tanh %282 : vector<8x96xf32>
    %cst_52 = arith.constant 1.000000e+00 : f32
    %284 = vector.broadcast %cst_52 : f32 to vector<8x96xf32>
    %285 = arith.addf %283, %284 : vector<8x96xf32>
    %cst_53 = arith.constant 5.000000e-01 : f32
    %286 = vector.broadcast %cst_53 : f32 to vector<8x96xf32>
    %287 = arith.mulf %286, %285 : vector<8x96xf32>
    %288 = vector.extract_strided_slice %276 {offsets = [0, 96], sizes = [8, 32], strides = [1, 1]} : vector<8x128xf32> to vector<8x32xf32>
    %289 = math.tanh %288 : vector<8x32xf32>
    %290 = vector.extract_strided_slice %287 {offsets = [0, 32], sizes = [8, 32], strides = [1, 1]} : vector<8x96xf32> to vector<8x32xf32>
    %291 = arith.mulf %290, %250 : vector<8x32xf32>
    %292 = vector.extract_strided_slice %287 {offsets = [0, 0], sizes = [8, 32], strides = [1, 1]} : vector<8x96xf32> to vector<8x32xf32>
    %293 = arith.mulf %292, %289 : vector<8x32xf32>
    %294 = arith.addf %291, %293 : vector<8x32xf32>
    %295 = vector.extract_strided_slice %287 {offsets = [0, 64], sizes = [8, 32], strides = [1, 1]} : vector<8x96xf32> to vector<8x32xf32>
    %296 = math.tanh %294 : vector<8x32xf32>
    %297 = arith.mulf %295, %296 : vector<8x32xf32>
    %298 = vector.extract_strided_slice %279 {offsets = [0, 0], sizes = [8, 96], strides = [1, 1]} : vector<8x128xf32> to vector<8x96xf32>
    %cst_54 = arith.constant 5.000000e-01 : f32
    %299 = vector.broadcast %cst_54 : f32 to vector<8x96xf32>
    %300 = arith.mulf %299, %298 : vector<8x96xf32>
    %301 = math.tanh %300 : vector<8x96xf32>
    %cst_55 = arith.constant 1.000000e+00 : f32
    %302 = vector.broadcast %cst_55 : f32 to vector<8x96xf32>
    %303 = arith.addf %301, %302 : vector<8x96xf32>
    %cst_56 = arith.constant 5.000000e-01 : f32
    %304 = vector.broadcast %cst_56 : f32 to vector<8x96xf32>
    %305 = arith.mulf %304, %303 : vector<8x96xf32>
    %306 = vector.extract_strided_slice %279 {offsets = [0, 96], sizes = [8, 32], strides = [1, 1]} : vector<8x128xf32> to vector<8x32xf32>
    %307 = math.tanh %306 : vector<8x32xf32>
    %308 = vector.extract_strided_slice %305 {offsets = [0, 32], sizes = [8, 32], strides = [1, 1]} : vector<8x96xf32> to vector<8x32xf32>
    %309 = arith.mulf %308, %268 : vector<8x32xf32>
    %310 = vector.extract_strided_slice %305 {offsets = [0, 0], sizes = [8, 32], strides = [1, 1]} : vector<8x96xf32> to vector<8x32xf32>
    %311 = arith.mulf %310, %307 : vector<8x32xf32>
    %312 = arith.addf %309, %311 : vector<8x32xf32>
    %313 = vector.extract_strided_slice %305 {offsets = [0, 64], sizes = [8, 32], strides = [1, 1]} : vector<8x96xf32> to vector<8x32xf32>
    %314 = math.tanh %312 : vector<8x32xf32>
    %315 = arith.mulf %313, %314 : vector<8x32xf32>
    %316 = tpu.concatenate %297, %315 in 0 : vector<8x32xf32>, vector<8x32xf32> -> vector<16x32xf32>
    %cst_57 = arith.constant dense<0.000000e+00> : vector<16x256xf32>
    %317 = tpu.matmul %316, %6, %cst_57 {dimension_numbers = #tpu.dot_dimension_numbers<[1], [0], [0], [1], [0, 0, 1, 1], [], []>} : vector<16x32xf32>, vector<32x256xf32>, vector<16x256xf32> -> vector<16x256xf32>
    %318 = vector.extract_strided_slice %5 {offsets = [56, 0], sizes = [8, 128], strides = [1, 1]} : vector<64x256xf32> to vector<8x128xf32>
    %319 = vector.extract_strided_slice %317 {offsets = [0, 0], sizes = [8, 128], strides = [1, 1]} : vector<16x256xf32> to vector<8x128xf32>
    %320 = arith.addf %318, %319 : vector<8x128xf32>
    %321 = vector.extract_strided_slice %5 {offsets = [0, 128], sizes = [8, 128], strides = [1, 1]} : vector<64x256xf32> to vector<8x128xf32>
    %322 = vector.extract_strided_slice %317 {offsets = [8, 128], sizes = [8, 128], strides = [1, 1]} : vector<16x256xf32> to vector<8x128xf32>
    %323 = arith.addf %321, %322 : vector<8x128xf32>
    %324 = vector.extract_strided_slice %320 {offsets = [0, 0], sizes = [8, 96], strides = [1, 1]} : vector<8x128xf32> to vector<8x96xf32>
    %cst_58 = arith.constant 5.000000e-01 : f32
    %325 = vector.broadcast %cst_58 : f32 to vector<8x96xf32>
    %326 = arith.mulf %325, %324 : vector<8x96xf32>
    %327 = math.tanh %326 : vector<8x96xf32>
    %cst_59 = arith.constant 1.000000e+00 : f32
    %328 = vector.broadcast %cst_59 : f32 to vector<8x96xf32>
    %329 = arith.addf %327, %328 : vector<8x96xf32>
    %cst_60 = arith.constant 5.000000e-01 : f32
    %330 = vector.broadcast %cst_60 : f32 to vector<8x96xf32>
    %331 = arith.mulf %330, %329 : vector<8x96xf32>
    %332 = vector.extract_strided_slice %320 {offsets = [0, 96], sizes = [8, 32], strides = [1, 1]} : vector<8x128xf32> to vector<8x32xf32>
    %333 = math.tanh %332 : vector<8x32xf32>
    %334 = vector.extract_strided_slice %331 {offsets = [0, 32], sizes = [8, 32], strides = [1, 1]} : vector<8x96xf32> to vector<8x32xf32>
    %335 = arith.mulf %334, %294 : vector<8x32xf32>
    %336 = vector.extract_strided_slice %331 {offsets = [0, 0], sizes = [8, 32], strides = [1, 1]} : vector<8x96xf32> to vector<8x32xf32>
    %337 = arith.mulf %336, %333 : vector<8x32xf32>
    %338 = arith.addf %335, %337 : vector<8x32xf32>
    %339 = vector.extract_strided_slice %331 {offsets = [0, 64], sizes = [8, 32], strides = [1, 1]} : vector<8x96xf32> to vector<8x32xf32>
    %340 = math.tanh %338 : vector<8x32xf32>
    %341 = arith.mulf %339, %340 : vector<8x32xf32>
    %342 = vector.extract_strided_slice %323 {offsets = [0, 0], sizes = [8, 96], strides = [1, 1]} : vector<8x128xf32> to vector<8x96xf32>
    %cst_61 = arith.constant 5.000000e-01 : f32
    %343 = vector.broadcast %cst_61 : f32 to vector<8x96xf32>
    %344 = arith.mulf %343, %342 : vector<8x96xf32>
    %345 = math.tanh %344 : vector<8x96xf32>
    %cst_62 = arith.constant 1.000000e+00 : f32
    %346 = vector.broadcast %cst_62 : f32 to vector<8x96xf32>
    %347 = arith.addf %345, %346 : vector<8x96xf32>
    %cst_63 = arith.constant 5.000000e-01 : f32
    %348 = vector.broadcast %cst_63 : f32 to vector<8x96xf32>
    %349 = arith.mulf %348, %347 : vector<8x96xf32>
    %350 = vector.extract_strided_slice %323 {offsets = [0, 96], sizes = [8, 32], strides = [1, 1]} : vector<8x128xf32> to vector<8x32xf32>
    %351 = math.tanh %350 : vector<8x32xf32>
    %352 = vector.extract_strided_slice %349 {offsets = [0, 32], sizes = [8, 32], strides = [1, 1]} : vector<8x96xf32> to vector<8x32xf32>
    %353 = arith.mulf %352, %312 : vector<8x32xf32>
    %354 = vector.extract_strided_slice %349 {offsets = [0, 0], sizes = [8, 32], strides = [1, 1]} : vector<8x96xf32> to vector<8x32xf32>
    %355 = arith.mulf %354, %351 : vector<8x32xf32>
    %356 = arith.addf %353, %355 : vector<8x32xf32>
    %357 = vector.extract_strided_slice %349 {offsets = [0, 64], sizes = [8, 32], strides = [1, 1]} : vector<8x96xf32> to vector<8x32xf32>
    %358 = math.tanh %356 : vector<8x32xf32>
    %359 = arith.mulf %357, %358 : vector<8x32xf32>
    %360 = tpu.concatenate %33, %359 in 1 : vector<8x32xf32>, vector<8x32xf32> -> vector<8x64xf32>
    %361 = tpu.concatenate %77, %315 in 1 : vector<8x32xf32>, vector<8x32xf32> -> vector<8x64xf32>
    %362 = tpu.concatenate %121, %271 in 1 : vector<8x32xf32>, vector<8x32xf32> -> vector<8x64xf32>
    %363 = tpu.concatenate %165, %227 in 1 : vector<8x32xf32>, vector<8x32xf32> -> vector<8x64xf32>
    %364 = tpu.concatenate %209, %183 in 1 : vector<8x32xf32>, vector<8x32xf32> -> vector<8x64xf32>
    %365 = tpu.concatenate %253, %139 in 1 : vector<8x32xf32>, vector<8x32xf32> -> vector<8x64xf32>
    %366 = tpu.concatenate %297, %95 in 1 : vector<8x32xf32>, vector<8x32xf32> -> vector<8x64xf32>
    %367 = tpu.concatenate %341, %51 in 1 : vector<8x32xf32>, vector<8x32xf32> -> vector<8x64xf32>
    %368 = tpu.concatenate %360, %361, %362, %363, %364, %365, %366, %367 in 0 : vector<8x64xf32>, vector<8x64xf32>, vector<8x64xf32>, vector<8x64xf32>, vector<8x64xf32>, vector<8x64xf32>, vector<8x64xf32>, vector<8x64xf32> -> vector<64x64xf32>
    %c0_64 = arith.constant 0 : index
    %c0_65 = arith.constant 0 : index
    %369 = vector.load %arg4[%c0_64, %c0_65] : memref<64x512xf32, #tpu.memory_space<vmem>>, vector<64x512xf32>
    %cst_66 = arith.constant dense<0.000000e+00> : vector<64x512xf32>
    %370 = tpu.matmul %368, %369, %cst_66 {dimension_numbers = #tpu.dot_dimension_numbers<[1], [0], [0], [1], [0, 0, 1, 1], [], []>} : vector<64x64xf32>, vector<64x512xf32>, vector<64x512xf32> -> vector<64x512xf32>
    %c0_67 = arith.constant 0 : index
    %c0_68 = arith.constant 0 : index
    %371 = vector.load %arg5[%c0_67, %c0_68] : memref<1x512xf32, #tpu.memory_space<vmem>>, vector<1x512xf32>
    %372 = vector.broadcast %371 : vector<1x512xf32> to vector<64x512xf32>
    %373 = arith.addf %370, %372 : vector<64x512xf32>
    %cst_69 = arith.constant 0.00999999977 : f32
    %374 = vector.broadcast %cst_69 : f32 to vector<64x512xf32>
    %375 = arith.mulf %374, %373 : vector<64x512xf32>
    %376 = arith.maximumf %373, %375 : vector<64x512xf32>
    %c0_70 = arith.constant 0 : index
    %c0_71 = arith.constant 0 : index
    %377 = vector.load %arg6[%c0_70, %c0_71] : memref<512x128xf32, #tpu.memory_space<vmem>>, vector<512x128xf32>
    %cst_72 = arith.constant dense<0.000000e+00> : vector<64x128xf32>
    %378 = tpu.matmul %376, %377, %cst_72 {dimension_numbers = #tpu.dot_dimension_numbers<[1], [0], [0], [1], [0, 0, 1, 1], [], []>} : vector<64x512xf32>, vector<512x128xf32>, vector<64x128xf32> -> vector<64x128xf32>
    %c0_73 = arith.constant 0 : index
    %c0_74 = arith.constant 0 : index
    %379 = vector.load %arg7[%c0_73, %c0_74] : memref<1x128xf32, #tpu.memory_space<vmem>>, vector<1x128xf32>
    %380 = vector.broadcast %379 : vector<1x128xf32> to vector<64x128xf32>
    %381 = arith.addf %378, %380 : vector<64x128xf32>
    %cst_75 = arith.constant 0.00999999977 : f32
    %382 = vector.broadcast %cst_75 : f32 to vector<64x128xf32>
    %383 = arith.mulf %382, %381 : vector<64x128xf32>
    %384 = arith.maximumf %381, %383 : vector<64x128xf32>
    %c0_76 = arith.constant 0 : index
    %c0_77 = arith.constant 0 : index
    %385 = vector.load %arg8[%c0_76, %c0_77] : memref<128x128xf32, #tpu.memory_space<vmem>>, vector<128x128xf32>
    %cst_78 = arith.constant dense<0.000000e+00> : vector<64x128xf32>
    %386 = tpu.matmul %384, %385, %cst_78 {dimension_numbers = #tpu.dot_dimension_numbers<[1], [0], [0], [1], [0, 0, 1, 1], [], []>} : vector<64x128xf32>, vector<128x128xf32>, vector<64x128xf32> -> vector<64x128xf32>
    %c0_79 = arith.constant 0 : index
    %c0_80 = arith.constant 0 : index
    %387 = vector.load %arg9[%c0_79, %c0_80] : memref<1x128xf32, #tpu.memory_space<vmem>>, vector<1x128xf32>
    %388 = vector.broadcast %387 : vector<1x128xf32> to vector<64x128xf32>
    %389 = arith.addf %386, %388 : vector<64x128xf32>
    %c0_81 = arith.constant 0 : index
    %c0_82 = arith.constant 0 : index
    %390 = vector.load %arg10[%c0_81, %c0_82] : memref<64x128xf32, #tpu.memory_space<vmem>>, vector<64x128xf32>
    tpu.vector_store %arg10[%c0_81, %c0_82], %389 {strides = array<i32>} : memref<64x128xf32, #tpu.memory_space<vmem>>, vector<64x128xf32>,
    return
  }
}

</mosaic_0001>

<llo_original>
// kernel: sentiment_forward.1
$region0: #{sentiment_forward.1}
  #allocation0 [shape = 'u32[]', space=smem, size = 0x4, offset = 0x4, fixed_abs, tag = 'smem constant byte address 0x4 - core index']
  #allocation1 [shape = 'u32[144,128]{1,0:T(1,128)}', space=vmem, size = 0x12000, scoped, tag = 'internal scratch']
  %s0 = inlined_call_operand.vmem [shape: f32[64,32], index: 0, kind: input, shape index: {}]
  %s1 = inlined_call_operand.vmem [shape: f32[32,256], index: 1, kind: input, shape index: {}]
  %s2 = inlined_call_operand.vmem [shape: f32[1,256], index: 2, kind: input, shape index: {}]
  %s3 = inlined_call_operand.hbm [shape: f32[32,256], index: 3, kind: input, shape index: {}]
  %s4 = inlined_call_operand.hbm [shape: f32[64,512], index: 4, kind: input, shape index: {}]
  %s5 = inlined_call_operand.vmem [shape: f32[1,512], index: 5, kind: input, shape index: {}]
  %s6 = inlined_call_operand.hbm [shape: f32[512,128], index: 6, kind: input, shape index: {}]
  %s7 = inlined_call_operand.vmem [shape: f32[1,128], index: 7, kind: input, shape index: {}]
  %s8 = inlined_call_operand.hbm [shape: f32[128,128], index: 8, kind: input, shape index: {}]
  %s9 = inlined_call_operand.vmem [shape: f32[1,128], index: 9, kind: input, shape index: {}]
  %s10 = inlined_call_operand.vmem [shape: f32[64,128], index: 10, kind: output, shape index: {}]
  %s11 = sld [smem:[#allocation0]]
  $region66: #{sentiment_forward.1} parent=0
    _
  %s13 = ssub.s32 1, %s11
  %s14 = scalar_select 0, %s13, %s11
  $region1: #{sentiment_forward.1} parent=0
    #allocation2 [shape = 'u8[32768]{0}', space=vmem, size = 0x8000, scoped, tag = 'input window, operand 3, single buffered']
    #allocation3 [shape = 's32[1]{0}', space=sflag, size = 0x4, scoped, tag = 'scoped memory for sentiment_forward.1']
    #allocation4 [shape = 'u8[131072]{0}', space=vmem, size = 0x20000, scoped, tag = 'input window, operand 4, single buffered']
    #allocation5 [shape = 's32[1]{0}', space=sflag, size = 0x4, scoped, tag = 'scoped memory for sentiment_forward.1']
    #allocation6 [shape = 'u8[262144]{0}', space=vmem, size = 0x40000, scoped, tag = 'input window, operand 6, single buffered']
    #allocation7 [shape = 'u8[65536]{0}', space=vmem, size = 0x10000, scoped, tag = 'input window, operand 8, single buffered']
    #allocation8 [shape = 's32[1]{0}', space=sflag, size = 0x4, scoped, tag = 'scoped memory for sentiment_forward.1']
    %15 = vsyncpa [#allocation3], 0
    %16 = vsyncpa [#allocation5], 0
    %17 = vsyncpa [#allocation8], 0
    // Predicated region
    $region2: #{sentiment_forward.1} parent=1 // pred_check
      _
    $region3: #{sentiment_forward.1} parent=1 // pred_check_branch
      %19 = sbr.rel (0) target = $region5
    $region4: #{sentiment_forward.1} parent=1 // pred_region
      _
    $region5: #{sentiment_forward.1} parent=1 // pred_fallthru
      _
    // Predicated region
    $region6: #{sentiment_forward.1} parent=1 // pred_check
      _
    $region7: #{sentiment_forward.1} parent=1 // pred_check_branch
      %21 = sbr.rel (0) target = $region9
    $region8: #{sentiment_forward.1} parent=1 // pred_region
      _
    $region9: #{sentiment_forward.1} parent=1 // pred_fallthru
      _
    // Predicated region
    $region10: #{sentiment_forward.1} parent=1 // pred_check
      _
    $region11: #{sentiment_forward.1} parent=1 // pred_check_branch
      %23 = sbr.rel (0) target = $region13
    $region12: #{sentiment_forward.1} parent=1 // pred_region
      _
    $region13: #{sentiment_forward.1} parent=1 // pred_fallthru
      _
    // Predicated region
    $region14: #{sentiment_forward.1} parent=1 // pred_check
      _
    $region15: #{sentiment_forward.1} parent=1 // pred_check_branch
      %25 = sbr.rel (0) target = $region17
    $region16: #{sentiment_forward.1} parent=1 // pred_region
      %s27 = ssub.s32 1024, 1024
      %28 = vsyncadd [#allocation3], %s27
      %s29 = sshll.u32 [#allocation2], 4
      %s30 = int_to_ptr.vmem [resolvable:$true] %s29
      %35 = dma.hbm_to_vmem [thread:$0]  %s3, 1024, %s30, [#allocation3], 256, 256, 16
    $region17: #{sentiment_forward.1} parent=1 // pred_fallthru
      _
    // Predicated region
    $region18: #{sentiment_forward.1} parent=1 // pred_check
      _
    $region19: #{sentiment_forward.1} parent=1 // pred_check_branch
      %37 = sbr.rel (0) target = $region21
    $region20: #{sentiment_forward.1} parent=1 // pred_region
      %s39 = ssub.s32 4096, 4096
      %40 = vsyncadd [#allocation5], %s39
      %s41 = sshll.u32 [#allocation4], 4
      %s42 = int_to_ptr.vmem [resolvable:$true] %s41
      %47 = dma.hbm_to_vmem [thread:$0]  %s4, 4096, %s42, [#allocation5], 512, 512, 32
    $region21: #{sentiment_forward.1} parent=1 // pred_fallthru
      _
    // Predicated region
    $region22: #{sentiment_forward.1} parent=1 // pred_check
      _
    $region23: #{sentiment_forward.1} parent=1 // pred_check_branch
      %49 = sbr.rel (0) target = $region25
    $region24: #{sentiment_forward.1} parent=1 // pred_region
      _
    $region25: #{sentiment_forward.1} parent=1 // pred_fallthru
      _
    // Predicated region
    $region26: #{sentiment_forward.1} parent=1 // pred_check
      _
    $region27: #{sentiment_forward.1} parent=1 // pred_check_branch
      %51 = sbr.rel (0) target = $region29
    $region28: #{sentiment_forward.1} parent=1 // pred_region
      %s53 = ssub.s32 8192, 8192
      %54 = vsyncadd [#allocation5], %s53
      %s55 = sshll.u32 [#allocation6], 4
      %s56 = int_to_ptr.vmem [resolvable:$true] %s55
      %61 = dma.hbm_to_vmem [thread:$0]  %s6, 8192, %s56, [#allocation5], 128, 128, 8
    $region29: #{sentiment_forward.1} parent=1 // pred_fallthru
      _
    // Predicated region
    $region30: #{sentiment_forward.1} parent=1 // pred_check
      _
    $region31: #{sentiment_forward.1} parent=1 // pred_check_branch
      %63 = sbr.rel (0) target = $region33
    $region32: #{sentiment_forward.1} parent=1 // pred_region
      _
    $region33: #{sentiment_forward.1} parent=1 // pred_fallthru
      _
    // Predicated region
    $region34: #{sentiment_forward.1} parent=1 // pred_check
      _
    $region35: #{sentiment_forward.1} parent=1 // pred_check_branch
      %65 = sbr.rel (0) target = $region37
    $region36: #{sentiment_forward.1} parent=1 // pred_region
      %s67 = ssub.s32 2048, 2048
      %68 = vsyncadd [#allocation8], %s67
      %s69 = sshll.u32 [#allocation7], 4
      %s70 = int_to_ptr.vmem [resolvable:$true] %s69
      %75 = dma.hbm_to_vmem [thread:$0]  %s8, 2048, %s70, [#allocation8], 128, 128, 8
    $region37: #{sentiment_forward.1} parent=1 // pred_fallthru
      _
    // Predicated region
    $region38: #{sentiment_forward.1} parent=1 // pred_check
      _
    $region39: #{sentiment_forward.1} parent=1 // pred_check_branch
      %77 = sbr.rel (0) target = $region41
    $region40: #{sentiment_forward.1} parent=1 // pred_region
      _
    $region41: #{sentiment_forward.1} parent=1 // pred_fallthru
      _
    // Predicated region
    $region42: #{sentiment_forward.1} parent=1 // pred_check
      _
    $region43: #{sentiment_forward.1} parent=1 // pred_check_branch
      %79 = sbr.rel (0) target = $region45
    $region44: #{sentiment_forward.1} parent=1 // pred_region
      %80 = dma.done [#allocation3], 1024
    $region45: #{sentiment_forward.1} parent=1 // pred_fallthru
      _
    // Predicated region
    $region46: #{sentiment_forward.1} parent=1 // pred_check
      _
    $region47: #{sentiment_forward.1} parent=1 // pred_check_branch
      %82 = sbr.rel (0) target = $region49
    $region48: #{sentiment_forward.1} parent=1 // pred_region
      %83 = dma.done [#allocation5], 4096
    $region49: #{sentiment_forward.1} parent=1 // pred_fallthru
      _
    // Predicated region
    $region50: #{sentiment_forward.1} parent=1 // pred_check
      _
    $region51: #{sentiment_forward.1} parent=1 // pred_check_branch
      %85 = sbr.rel (0) target = $region53
    $region52: #{sentiment_forward.1} parent=1 // pred_region
      %86 = dma.done [#allocation5], 8192
    $region53: #{sentiment_forward.1} parent=1 // pred_fallthru
      _
    // Predicated region
    $region54: #{sentiment_forward.1} parent=1 // pred_check
      _
    $region55: #{sentiment_forward.1} parent=1 // pred_check_branch
      %88 = sbr.rel (0) target = $region57
    $region56: #{sentiment_forward.1} parent=1 // pred_region
      %89 = dma.done [#allocation8], 2048
    $region57: #{sentiment_forward.1} parent=1 // pred_fallthru
      _
    %v90 = vld [vmem:[%s0] sm:$0xff]
    %v91 = vld [vmem:[%s0 + $0x8] sm:$0xff]
    %v92 = vld [vmem:[%s0 + $0x10] sm:$0xff]
    %v93 = vld [vmem:[%s0 + $0x18] sm:$0xff]
    %v94 = vld [vmem:[%s0 + $0x20] sm:$0xff]
    %v95 = vld [vmem:[%s0 + $0x28] sm:$0xff]
    %v96 = vld [vmem:[%s0 + $0x30] sm:$0xff]
    %v97 = vld [vmem:[%s0 + $0x38] sm:$0xff]
    %v98 = vld [vmem:[%s1] sm:$0xff]
    %v99 = vld [vmem:[%s1 + $0x8] sm:$0xff]
    %v100 = vld [vmem:[%s1 + $0x10] sm:$0xff]
    %v101 = vld [vmem:[%s1 + $0x18] sm:$0xff]
    %v102 = vld [vmem:[%s1 + $0x20] sm:$0xff]
    %v103 = vld [vmem:[%s1 + $0x28] sm:$0xff]
    %v104 = vld [vmem:[%s1 + $0x30] sm:$0xff]
    %v105 = vld [vmem:[%s1 + $0x38] sm:$0xff]
    %v106 = vld [vmem:[%s2] sm:$0x3]
    %v108 = vlaneseq
    %v109 = vshrl.u32 %v108, 7
    %v110 = vsub.s32 0, %v109
    %v111 = vrot.slane %v106, %v110
    %v112 = vlaneseq
    %v113 = vshrl.u32 %v112, 7
    %v114 = vsub.s32 1, %v113
    %v115 = vrot.slane %v106, %v114
    %vm118 = vcmask 261120
    %v120 = vsel %vm118, %v90, 0
    %v123 = vsel %vm118, %v91, 0
    %v126 = vsel %vm118, %v92, 0
    %v129 = vsel %vm118, %v93, 0
    %v132 = vsel %vm118, %v94, 0
    %v135 = vsel %vm118, %v95, 0
    %v138 = vsel %vm118, %v96, 0
    %v141 = vsel %vm118, %v97, 0
    %143 = vmatprep.subr.mxu0 %v99
    %144 = vmatpush1.msra.mxu0 %v98
    %145 = vmatprep.subr.mxu0 %v101
    %146 = vmatpush1.msra.mxu0 %v100
    %147 = vmatprep.subr.mxu0 %v103
    %148 = vmatpush1.msra.mxu0 %v102
    %149 = vmatprep.subr.mxu0 %v105
    %150 = vmatpush1.msra.mxu0 %v104
    %151 = vmatprep.subr.mxu0 0.0
    %152 = vmatpush1.msra.mxu0 0.0
    %153 = vmatprep.subr.mxu0 0.0
    %154 = vmatpush1.msra.mxu0 0.0
    %155 = vmatprep.subr.mxu0 0.0
    %156 = vmatpush1.msra.mxu0 0.0
    %157 = vmatprep.subr.mxu0 0.0
    %158 = vmatpush1.msra.mxu0 0.0
    %159 = vmatprep.subr.mxu0 0.0
    %160 = vmatpush1.msra.mxu0 0.0
    %161 = vmatprep.subr.mxu0 0.0
    %162 = vmatpush1.msra.mxu0 0.0
    %163 = vmatprep.subr.mxu0 0.0
    %164 = vmatpush1.msra.mxu0 0.0
    %165 = vmatprep.subr.mxu0 0.0
    %166 = vmatpush1.msra.mxu0 0.0
    %167 = vmatprep.subr.mxu0 0.0
    %168 = vmatpush1.msra.mxu0 0.0
    %169 = vmatprep.subr.mxu0 0.0
    %170 = vmatpush1.msra.mxu0 0.0
    %171 = vmatprep.subr.mxu0 0.0
    %172 = vmatpush1.msra.mxu0 0.0
    %173 = vmatprep.subr.mxu0 0.0
    %174 = vmatpush1.msra.mxu0 0.0
    %175 = vmatprep.subr.mxu0 0.0
    %176 = vmatpush1.msra.mxu0 0.0
    %177 = vmatprep.subr.mxu0 0.0
    %178 = vmatpush1.msra.mxu0 0.0
    %179 = vmatprep.subr.mxu0 0.0
    %180 = vmatpush1.msra.mxu0 0.0
    %181 = vmatprep.subr.mxu0 0.0
    %182 = vmatpush1.msra.mxu0 0.0
    %183 = vmatprep.subr.mxu0 0.0
    %184 = vmatpush1.msra.mxu0 0.0
    %185 = vmatprep.subr.mxu0 0.0
    %186 = vmatpush1.msra.mxu0 0.0
    %187 = vmatprep.subr.mxu0 0.0
    %188 = vmatpush1.msra.mxu0 0.0
    %189 = vmatprep.subr.mxu0 0.0
    %190 = vmatpush1.msra.mxu0 0.0
    %191 = vmatprep.subr.mxu0 0.0
    %192 = vmatpush1.msra.mxu0 0.0
    %193 = vmatprep.subr.mxu0 0.0
    %194 = vmatpush1.msra.mxu0 0.0
    %195 = vmatprep.subr.mxu0 0.0
    %196 = vmatpush1.msra.mxu0 0.0
    %197 = vmatprep.subr.mxu0 0.0
    %198 = vmatpush1.msra.mxu0 0.0
    %199 = vmatprep.subr.mxu0 0.0
    %200 = vmatpush1.msra.mxu0 0.0
    %201 = vmatprep.subr.mxu0 0.0
    %202 = vmatpush1.msra.mxu0 0.0
    %203 = vmatprep.subr.mxu0 0.0
    %204 = vmatpush1.msra.mxu0 0.0
    %205 = vmatprep.subr.mxu0 0.0
    %206 = vmatpush1.msra.mxu0 0.0
    %207 = vmatprep.mubr.f32.mxu0 0.0
    %208 = vmatmul.mubr.f32.gmra.mrb[0].mxu0 %v120
    %v209 = vpop.f32.mrb[0].mxu0
    %v210 = vadd.f32 %v111, %v209
    %v211 = vpop.f32.mrb[0].mxu0
    %v212 = vadd.f32 %v115, %v211
    %213 = vmatprep.mubr.f32.mxu0 0.0
    %214 = vmatmul.mubr.f32.gmra.mrb[0].mxu0 %v123
    %v215 = vpop.f32.mrb[0].mxu0
    %v216 = vadd.f32 %v111, %v215
    %v217 = vpop.f32.mrb[0].mxu0
    %v218 = vadd.f32 %v115, %v217
    %219 = vmatprep.mubr.f32.mxu0 0.0
    %220 = vmatmul.mubr.f32.gmra.mrb[0].mxu0 %v126
    %v221 = vpop.f32.mrb[0].mxu0
    %v222 = vadd.f32 %v111, %v221
    %v223 = vpop.f32.mrb[0].mxu0
    %v224 = vadd.f32 %v115, %v223
    %225 = vmatprep.mubr.f32.mxu0 0.0
    %226 = vmatmul.mubr.f32.gmra.mrb[0].mxu0 %v129
    %v227 = vpop.f32.mrb[0].mxu0
    %v228 = vadd.f32 %v111, %v227
    %v229 = vpop.f32.mrb[0].mxu0
    %v230 = vadd.f32 %v115, %v229
    %231 = vmatprep.mubr.f32.mxu0 0.0
    %232 = vmatmul.mubr.f32.gmra.mrb[0].mxu0 %v132
    %v233 = vpop.f32.mrb[0].mxu0
    %v234 = vadd.f32 %v111, %v233
    %v235 = vpop.f32.mrb[0].mxu0
    %v236 = vadd.f32 %v115, %v235
    %237 = vmatprep.mubr.f32.mxu0 0.0
    %238 = vmatmul.mubr.f32.gmra.mrb[0].mxu0 %v135
    %v239 = vpop.f32.mrb[0].mxu0
    %v240 = vadd.f32 %v111, %v239
    %v241 = vpop.f32.mrb[0].mxu0
    %v242 = vadd.f32 %v115, %v241
    %243 = vmatprep.mubr.f32.mxu0 0.0
    %244 = vmatmul.mubr.f32.gmra.mrb[0].mxu0 %v138
    %v245 = vpop.f32.mrb[0].mxu0
    %v246 = vadd.f32 %v111, %v245
    %v247 = vpop.f32.mrb[0].mxu0
    %v248 = vadd.f32 %v115, %v247
    %249 = vmatprep.mubr.f32.mxu0 0.0
    %250 = vmatmul.mubr.f32.gmra.mrb[0].mxu0 %v141
    %v251 = vpop.f32.mrb[0].mxu0
    %v252 = vadd.f32 %v111, %v251
    %v253 = vpop.f32.mrb[0].mxu0
    %v254 = vadd.f32 %v115, %v253
    %255 = vdwg.mxu0
    %v256 = vld [vmem:[#allocation2] sm:$0xff]
    %v257 = vld [vmem:[#allocation2 + $0x8] sm:$0xff]
    %v258 = vld [vmem:[#allocation2 + $0x10] sm:$0xff]
    %v259 = vld [vmem:[#allocation2 + $0x18] sm:$0xff]
    %v260 = vld [vmem:[#allocation2 + $0x20] sm:$0xff]
    %v261 = vld [vmem:[#allocation2 + $0x28] sm:$0xff]
    %v262 = vld [vmem:[#allocation2 + $0x30] sm:$0xff]
    %v263 = vld [vmem:[#allocation2 + $0x38] sm:$0xff]
    %v265 = vsel %vm118, 0.0, 0
    %267 = vmatprep.subr.mxu0 %v257
    %268 = vmatpush1.msra.mxu0 %v256
    %269 = vmatprep.subr.mxu0 %v259
    %270 = vmatpush1.msra.mxu0 %v258
    %271 = vmatprep.subr.mxu0 %v261
    %272 = vmatpush1.msra.mxu0 %v260
    %273 = vmatprep.subr.mxu0 %v263
    %274 = vmatpush1.msra.mxu0 %v262
    %275 = vmatprep.subr.mxu0 0.0
    %276 = vmatpush1.msra.mxu0 0.0
    %277 = vmatprep.subr.mxu0 0.0
    %278 = vmatpush1.msra.mxu0 0.0
    %279 = vmatprep.subr.mxu0 0.0
    %280 = vmatpush1.msra.mxu0 0.0
    %281 = vmatprep.subr.mxu0 0.0
    %282 = vmatpush1.msra.mxu0 0.0
    %283 = vmatprep.subr.mxu0 0.0
    %284 = vmatpush1.msra.mxu0 0.0
    %285 = vmatprep.subr.mxu0 0.0
    %286 = vmatpush1.msra.mxu0 0.0
    %287 = vmatprep.subr.mxu0 0.0
    %288 = vmatpush1.msra.mxu0 0.0
    %289 = vmatprep.subr.mxu0 0.0
    %290 = vmatpush1.msra.mxu0 0.0
    %291 = vmatprep.subr.mxu0 0.0
    %292 = vmatpush1.msra.mxu0 0.0
    %293 = vmatprep.subr.mxu0 0.0
    %294 = vmatpush1.msra.mxu0 0.0
    %295 = vmatprep.subr.mxu0 0.0
    %296 = vmatpush1.msra.mxu0 0.0
    %297 = vmatprep.subr.mxu0 0.0
    %298 = vmatpush1.msra.mxu0 0.0
    %299 = vmatprep.subr.mxu0 0.0
    %300 = vmatpush1.msra.mxu0 0.0
    %301 = vmatprep.subr.mxu0 0.0
    %302 = vmatpush1.msra.mxu0 0.0
    %303 = vmatprep.subr.mxu0 0.0
    %304 = vmatpush1.msra.mxu0 0.0
    %305 = vmatprep.subr.mxu0 0.0
    %306 = vmatpush1.msra.mxu0 0.0
    %307 = vmatprep.subr.mxu0 0.0
    %308 = vmatpush1.msra.mxu0 0.0
    %309 = vmatprep.subr.mxu0 0.0
    %310 = vmatpush1.msra.mxu0 0.0
    %311 = vmatprep.subr.mxu0 0.0
    %312 = vmatpush1.msra.mxu0 0.0
    %313 = vmatprep.subr.mxu0 0.0
    %314 = vmatpush1.msra.mxu0 0.0
    %315 = vmatprep.subr.mxu0 0.0
    %316 = vmatpush1.msra.mxu0 0.0
    %317 = vmatprep.subr.mxu0 0.0
    %318 = vmatpush1.msra.mxu0 0.0
    %319 = vmatprep.subr.mxu0 0.0
    %320 = vmatpush1.msra.mxu0 0.0
    %321 = vmatprep.subr.mxu0 0.0
    %322 = vmatpush1.msra.mxu0 0.0
    %323 = vmatprep.subr.mxu0 0.0
    %324 = vmatpush1.msra.mxu0 0.0
    %325 = vmatprep.subr.mxu0 0.0
    %326 = vmatpush1.msra.mxu0 0.0
    %327 = vmatprep.subr.mxu0 0.0
    %328 = vmatpush1.msra.mxu0 0.0
    %329 = vmatprep.subr.mxu0 0.0
    %330 = vmatpush1.msra.mxu0 0.0
    %331 = vmatprep.mubr.f32.mxu0 0.0
    %332 = vmatmul.mubr.f32.gmra.mrb[0].mxu0 %v265
    %v333 = vpop.f32.mrb[0].mxu0
    %v334 = vadd.f32 0.0, %v333
    %v335 = vpop.f32.mrb[0].mxu0
    %336 = vmatprep.mubr.f32.mxu0 0.0
    %337 = vmatmul.mubr.f32.gmra.mrb[0].mxu0 %v265
    %v338 = vpop.f32.mrb[0].mxu0
    %v339 = vpop.f32.mrb[0].mxu0
    %v340 = vadd.f32 0.0, %v339
    %341 = vdwg.mxu0
    %v342 = vadd.f32 %v210, %v334
    %v343 = vadd.f32 %v254, %v340
    %v344 = vmul.f32 %v342, 0.5
    %v345 = vtanh.pop %v344
    %v346 = vadd.f32 %v345, 1.0
    %v347 = vmul.f32 %v346, 0.5
    %v348 = vtanh.pop %v342
    %v349 = vmul.f32 %v347, 0.0
    %351 = vrot.lane.b32.xlu0 %v348, 32
    %v352 = vpop.permute.xlu0 %351
    %v354 = vmul.f32 %v347, %v352
    %356 = vrot.lane.b32.xlu0 %v354, 32
    %v357 = vpop.permute.xlu0 %356
    %v359 = vadd.f32 %v349, %v357
    %v360 = vtanh.pop %v359
    %362 = vrot.lane.b32.xlu0 %v360, 32
    %v363 = vpop.permute.xlu0 %362
    %v365 = vmul.f32 %v347, %v363
    %v366 = vmul.f32 %v343, 0.5
    %v367 = vtanh.pop %v366
    %v368 = vadd.f32 %v367, 1.0
    %v369 = vmul.f32 %v368, 0.5
    %v370 = vtanh.pop %v343
    %v371 = vmul.f32 %v369, 0.0
    %373 = vrot.lane.b32.xlu0 %v370, 32
    %v374 = vpop.permute.xlu0 %373
    %v376 = vmul.f32 %v369, %v374
    %378 = vrot.lane.b32.xlu0 %v376, 32
    %v379 = vpop.permute.xlu0 %378
    %v381 = vadd.f32 %v371, %v379
    %v382 = vtanh.pop %v381
    %384 = vrot.lane.b32.xlu0 %v382, 32
    %v385 = vpop.permute.xlu0 %384
    %v387 = vmul.f32 %v369, %v385
    %390 = vrot.lane.b32.xlu0 %v365, 64
    %v391 = vpop.permute.xlu0 %390
    %392 = vrot.lane.b32.xlu0 %v387, 64
    %v393 = vpop.permute.xlu0 %392
    %v394 = vsel %vm118, %v391, 0
    %v396 = vsel %vm118, %v393, 0
    %398 = vmatprep.subr.mxu0 %v257
    %399 = vmatpush1.msra.mxu0 %v256
    %400 = vmatprep.subr.mxu0 %v259
    %401 = vmatpush1.msra.mxu0 %v258
    %402 = vmatprep.subr.mxu0 %v261
    %403 = vmatpush1.msra.mxu0 %v260
    %404 = vmatprep.subr.mxu0 %v263
    %405 = vmatpush1.msra.mxu0 %v262
    %406 = vmatprep.subr.mxu0 0.0
    %407 = vmatpush1.msra.mxu0 0.0
    %408 = vmatprep.subr.mxu0 0.0
    %409 = vmatpush1.msra.mxu0 0.0
    %410 = vmatprep.subr.mxu0 0.0
    %411 = vmatpush1.msra.mxu0 0.0
    %412 = vmatprep.subr.mxu0 0.0
    %413 = vmatpush1.msra.mxu0 0.0
    %414 = vmatprep.subr.mxu0 0.0
    %415 = vmatpush1.msra.mxu0 0.0
    %416 = vmatprep.subr.mxu0 0.0
    %417 = vmatpush1.msra.mxu0 0.0
    %418 = vmatprep.subr.mxu0 0.0
    %419 = vmatpush1.msra.mxu0 0.0
    %420 = vmatprep.subr.mxu0 0.0
    %421 = vmatpush1.msra.mxu0 0.0
    %422 = vmatprep.subr.mxu0 0.0
    %423 = vmatpush1.msra.mxu0 0.0
    %424 = vmatprep.subr.mxu0 0.0
    %425 = vmatpush1.msra.mxu0 0.0
    %426 = vmatprep.subr.mxu0 0.0
    %427 = vmatpush1.msra.mxu0 0.0
    %428 = vmatprep.subr.mxu0 0.0
    %429 = vmatpush1.msra.mxu0 0.0
    %430 = vmatprep.subr.mxu0 0.0
    %431 = vmatpush1.msra.mxu0 0.0
    %432 = vmatprep.subr.mxu0 0.0
    %433 = vmatpush1.msra.mxu0 0.0
    %434 = vmatprep.subr.mxu0 0.0
    %435 = vmatpush1.msra.mxu0 0.0
    %436 = vmatprep.subr.mxu0 0.0
    %437 = vmatpush1.msra.mxu0 0.0
    %438 = vmatprep.subr.mxu0 0.0
    %439 = vmatpush1.msra.mxu0 0.0
    %440 = vmatprep.subr.mxu0 0.0
    %441 = vmatpush1.msra.mxu0 0.0
    %442 = vmatprep.subr.mxu0 0.0
    %443 = vmatpush1.msra.mxu0 0.0
    %444 = vmatprep.subr.mxu0 0.0
    %445 = vmatpush1.msra.mxu0 0.0
    %446 = vmatprep.subr.mxu0 0.0
    %447 = vmatpush1.msra.mxu0 0.0
    %448 = vmatprep.subr.mxu0 0.0
    %449 = vmatpush1.msra.mxu0 0.0
    %450 = vmatprep.subr.mxu0 0.0
    %451 = vmatpush1.msra.mxu0 0.0
    %452 = vmatprep.subr.mxu0 0.0
    %453 = vmatpush1.msra.mxu0 0.0
    %454 = vmatprep.subr.mxu0 0.0
    %455 = vmatpush1.msra.mxu0 0.0
    %456 = vmatprep.subr.mxu0 0.0
    %457 = vmatpush1.msra.mxu0 0.0
    %458 = vmatprep.subr.mxu0 0.0
    %459 = vmatpush1.msra.mxu0 0.0
    %460 = vmatprep.subr.mxu0 0.0
    %461 = vmatpush1.msra.mxu0 0.0
    %462 = vmatprep.mubr.f32.mxu0 0.0
    %463 = vmatmul.mubr.f32.gmra.mrb[0].mxu0 %v394
    %v464 = vpop.f32.mrb[0].mxu0
    %v465 = vadd.f32 0.0, %v464
    %v466 = vpop.f32.mrb[0].mxu0
    %467 = vmatprep.mubr.f32.mxu0 0.0
    %468 = vmatmul.mubr.f32.gmra.mrb[0].mxu0 %v396
    %v469 = vpop.f32.mrb[0].mxu0
    %v470 = vpop.f32.mrb[0].mxu0
    %v471 = vadd.f32 0.0, %v470
    %472 = vdwg.mxu0
    %v473 = vadd.f32 %v216, %v465
    %v474 = vadd.f32 %v248, %v471
    %v475 = vmul.f32 %v473, 0.5
    %v476 = vtanh.pop %v475
    %v477 = vadd.f32 %v476, 1.0
    %v478 = vmul.f32 %v477, 0.5
    %v479 = vtanh.pop %v473
    %v480 = vmul.f32 %v478, %v359
    %482 = vrot.lane.b32.xlu0 %v479, 32
    %v483 = vpop.permute.xlu0 %482
    %v485 = vmul.f32 %v478, %v483
    %487 = vrot.lane.b32.xlu0 %v485, 32
    %v488 = vpop.permute.xlu0 %487
    %v490 = vadd.f32 %v480, %v488
    %v491 = vtanh.pop %v490
    %493 = vrot.lane.b32.xlu0 %v491, 32
    %v494 = vpop.permute.xlu0 %493
    %v496 = vmul.f32 %v478, %v494
    %v497 = vmul.f32 %v474, 0.5
    %v498 = vtanh.pop %v497
    %v499 = vadd.f32 %v498, 1.0
    %v500 = vmul.f32 %v499, 0.5
    %v501 = vtanh.pop %v474
    %v502 = vmul.f32 %v500, %v381
    %504 = vrot.lane.b32.xlu0 %v501, 32
    %v505 = vpop.permute.xlu0 %504
    %v507 = vmul.f32 %v500, %v505
    %509 = vrot.lane.b32.xlu0 %v507, 32
    %v510 = vpop.permute.xlu0 %509
    %v512 = vadd.f32 %v502, %v510
    %v513 = vtanh.pop %v512
    %515 = vrot.lane.b32.xlu0 %v513, 32
    %v516 = vpop.permute.xlu0 %515
    %v518 = vmul.f32 %v500, %v516
    %521 = vrot.lane.b32.xlu0 %v496, 64
    %v522 = vpop.permute.xlu0 %521
    %523 = vrot.lane.b32.xlu0 %v518, 64
    %v524 = vpop.permute.xlu0 %523
    %v525 = vsel %vm118, %v522, 0
    %v527 = vsel %vm118, %v524, 0
    %529 = vmatprep.subr.mxu0 %v257
    %530 = vmatpush1.msra.mxu0 %v256
    %531 = vmatprep.subr.mxu0 %v259
    %532 = vmatpush1.msra.mxu0 %v258
    %533 = vmatprep.subr.mxu0 %v261
    %534 = vmatpush1.msra.mxu0 %v260
    %535 = vmatprep.subr.mxu0 %v263
    %536 = vmatpush1.msra.mxu0 %v262
    %537 = vmatprep.subr.mxu0 0.0
    %538 = vmatpush1.msra.mxu0 0.0
    %539 = vmatprep.subr.mxu0 0.0
    %540 = vmatpush1.msra.mxu0 0.0
    %541 = vmatprep.subr.mxu0 0.0
    %542 = vmatpush1.msra.mxu0 0.0
    %543 = vmatprep.subr.mxu0 0.0
    %544 = vmatpush1.msra.mxu0 0.0
    %545 = vmatprep.subr.mxu0 0.0
    %546 = vmatpush1.msra.mxu0 0.0
    %547 = vmatprep.subr.mxu0 0.0
    %548 = vmatpush1.msra.mxu0 0.0
    %549 = vmatprep.subr.mxu0 0.0
    %550 = vmatpush1.msra.mxu0 0.0
    %551 = vmatprep.subr.mxu0 0.0
    %552 = vmatpush1.msra.mxu0 0.0
    %553 = vmatprep.subr.mxu0 0.0
    %554 = vmatpush1.msra.mxu0 0.0
    %555 = vmatprep.subr.mxu0 0.0
    %556 = vmatpush1.msra.mxu0 0.0
    %557 = vmatprep.subr.mxu0 0.0
    %558 = vmatpush1.msra.mxu0 0.0
    %559 = vmatprep.subr.mxu0 0.0
    %560 = vmatpush1.msra.mxu0 0.0
    %561 = vmatprep.subr.mxu0 0.0
    %562 = vmatpush1.msra.mxu0 0.0
    %563 = vmatprep.subr.mxu0 0.0
    %564 = vmatpush1.msra.mxu0 0.0
    %565 = vmatprep.subr.mxu0 0.0
    %566 = vmatpush1.msra.mxu0 0.0
    %567 = vmatprep.subr.mxu0 0.0
    %568 = vmatpush1.msra.mxu0 0.0
    %569 = vmatprep.subr.mxu0 0.0
    %570 = vmatpush1.msra.mxu0 0.0
    %571 = vmatprep.subr.mxu0 0.0
    %572 = vmatpush1.msra.mxu0 0.0
    %573 = vmatprep.subr.mxu0 0.0
    %574 = vmatpush1.msra.mxu0 0.0
    %575 = vmatprep.subr.mxu0 0.0
    %576 = vmatpush1.msra.mxu0 0.0
    %577 = vmatprep.subr.mxu0 0.0
    %578 = vmatpush1.msra.mxu0 0.0
    %579 = vmatprep.subr.mxu0 0.0
    %580 = vmatpush1.msra.mxu0 0.0
    %581 = vmatprep.subr.mxu0 0.0
    %582 = vmatpush1.msra.mxu0 0.0
    %583 = vmatprep.subr.mxu0 0.0
    %584 = vmatpush1.msra.mxu0 0.0
    %585 = vmatprep.subr.mxu0 0.0
    %586 = vmatpush1.msra.mxu0 0.0
    %587 = vmatprep.subr.mxu0 0.0
    %588 = vmatpush1.msra.mxu0 0.0
    %589 = vmatprep.subr.mxu0 0.0
    %590 = vmatpush1.msra.mxu0 0.0
    %591 = vmatprep.subr.mxu0 0.0
    %592 = vmatpush1.msra.mxu0 0.0
    %593 = vmatprep.mubr.f32.mxu0 0.0
    %594 = vmatmul.mubr.f32.gmra.mrb[0].mxu0 %v525
    %v595 = vpop.f32.mrb[0].mxu0
    %v596 = vadd.f32 0.0, %v595
    %v597 = vpop.f32.mrb[0].mxu0
    %598 = vmatprep.mubr.f32.mxu0 0.0
    %599 = vmatmul.mubr.f32.gmra.mrb[0].mxu0 %v527
    %v600 = vpop.f32.mrb[0].mxu0
    %v601 = vpop.f32.mrb[0].mxu0
    %v602 = vadd.f32 0.0, %v601
    %603 = vdwg.mxu0
    %v604 = vadd.f32 %v222, %v596
    %v605 = vadd.f32 %v242, %v602
    %v606 = vmul.f32 %v604, 0.5
    %v607 = vtanh.pop %v606
    %v608 = vadd.f32 %v607, 1.0
    %v609 = vmul.f32 %v608, 0.5
    %v610 = vtanh.pop %v604
    %v611 = vmul.f32 %v609, %v490
    %613 = vrot.lane.b32.xlu0 %v610, 32
    %v614 = vpop.permute.xlu0 %613
    %v616 = vmul.f32 %v609, %v614
    %618 = vrot.lane.b32.xlu0 %v616, 32
    %v619 = vpop.permute.xlu0 %618
    %v621 = vadd.f32 %v611, %v619
    %v622 = vtanh.pop %v621
    %624 = vrot.lane.b32.xlu0 %v622, 32
    %v625 = vpop.permute.xlu0 %624
    %v627 = vmul.f32 %v609, %v625
    %v628 = vmul.f32 %v605, 0.5
    %v629 = vtanh.pop %v628
    %v630 = vadd.f32 %v629, 1.0
    %v631 = vmul.f32 %v630, 0.5
    %v632 = vtanh.pop %v605
    %v633 = vmul.f32 %v631, %v512
    %635 = vrot.lane.b32.xlu0 %v632, 32
    %v636 = vpop.permute.xlu0 %635
    %v638 = vmul.f32 %v631, %v636
    %640 = vrot.lane.b32.xlu0 %v638, 32
    %v641 = vpop.permute.xlu0 %640
    %v643 = vadd.f32 %v633, %v641
    %v644 = vtanh.pop %v643
    %646 = vrot.lane.b32.xlu0 %v644, 32
    %v647 = vpop.permute.xlu0 %646
    %v649 = vmul.f32 %v631, %v647
    %652 = vrot.lane.b32.xlu0 %v627, 64
    %v653 = vpop.permute.xlu0 %652
    %654 = vrot.lane.b32.xlu0 %v649, 64
    %v655 = vpop.permute.xlu0 %654
    %v656 = vsel %vm118, %v653, 0
    %v658 = vsel %vm118, %v655, 0
    %660 = vmatprep.subr.mxu0 %v257
    %661 = vmatpush1.msra.mxu0 %v256
    %662 = vmatprep.subr.mxu0 %v259
    %663 = vmatpush1.msra.mxu0 %v258
    %664 = vmatprep.subr.mxu0 %v261
    %665 = vmatpush1.msra.mxu0 %v260
    %666 = vmatprep.subr.mxu0 %v263
    %667 = vmatpush1.msra.mxu0 %v262
    %668 = vmatprep.subr.mxu0 0.0
    %669 = vmatpush1.msra.mxu0 0.0
    %670 = vmatprep.subr.mxu0 0.0
    %671 = vmatpush1.msra.mxu0 0.0
    %672 = vmatprep.subr.mxu0 0.0
    %673 = vmatpush1.msra.mxu0 0.0
    %674 = vmatprep.subr.mxu0 0.0
    %675 = vmatpush1.msra.mxu0 0.0
    %676 = vmatprep.subr.mxu0 0.0
    %677 = vmatpush1.msra.mxu0 0.0
    %678 = vmatprep.subr.mxu0 0.0
    %679 = vmatpush1.msra.mxu0 0.0
    %680 = vmatprep.subr.mxu0 0.0
    %681 = vmatpush1.msra.mxu0 0.0
    %682 = vmatprep.subr.mxu0 0.0
    %683 = vmatpush1.msra.mxu0 0.0
    %684 = vmatprep.subr.mxu0 0.0
    %685 = vmatpush1.msra.mxu0 0.0
    %686 = vmatprep.subr.mxu0 0.0
    %687 = vmatpush1.msra.mxu0 0.0
    %688 = vmatprep.subr.mxu0 0.0
    %689 = vmatpush1.msra.mxu0 0.0
    %690 = vmatprep.subr.mxu0 0.0
    %691 = vmatpush1.msra.mxu0 0.0
    %692 = vmatprep.subr.mxu0 0.0
    %693 = vmatpush1.msra.mxu0 0.0
    %694 = vmatprep.subr.mxu0 0.0
    %695 = vmatpush1.msra.mxu0 0.0
    %696 = vmatprep.subr.mxu0 0.0
    %697 = vmatpush1.msra.mxu0 0.0
    %698 = vmatprep.subr.mxu0 0.0
    %699 = vmatpush1.msra.mxu0 0.0
    %700 = vmatprep.subr.mxu0 0.0
    %701 = vmatpush1.msra.mxu0 0.0
    %702 = vmatprep.subr.mxu0 0.0
    %703 = vmatpush1.msra.mxu0 0.0
    %704 = vmatprep.subr.mxu0 0.0
    %705 = vmatpush1.msra.mxu0 0.0
    %706 = vmatprep.subr.mxu0 0.0
    %707 = vmatpush1.msra.mxu0 0.0
    %708 = vmatprep.subr.mxu0 0.0
    %709 = vmatpush1.msra.mxu0 0.0
    %710 = vmatprep.subr.mxu0 0.0
    %711 = vmatpush1.msra.mxu0 0.0
    %712 = vmatprep.subr.mxu0 0.0
    %713 = vmatpush1.msra.mxu0 0.0
    %714 = vmatprep.subr.mxu0 0.0
    %715 = vmatpush1.msra.mxu0 0.0
    %716 = vmatprep.subr.mxu0 0.0
    %717 = vmatpush1.msra.mxu0 0.0
    %718 = vmatprep.subr.mxu0 0.0
    %719 = vmatpush1.msra.mxu0 0.0
    %720 = vmatprep.subr.mxu0 0.0
    %721 = vmatpush1.msra.mxu0 0.0
    %722 = vmatprep.subr.mxu0 0.0
    %723 = vmatpush1.msra.mxu0 0.0
    %724 = vmatprep.mubr.f32.mxu0 0.0
    %725 = vmatmul.mubr.f32.gmra.mrb[0].mxu0 %v656
    %v726 = vpop.f32.mrb[0].mxu0
    %v727 = vadd.f32 0.0, %v726
    %v728 = vpop.f32.mrb[0].mxu0
    %729 = vmatprep.mubr.f32.mxu0 0.0
    %730 = vmatmul.mubr.f32.gmra.mrb[0].mxu0 %v658
    %v731 = vpop.f32.mrb[0].mxu0
    %v732 = vpop.f32.mrb[0].mxu0
    %v733 = vadd.f32 0.0, %v732
    %734 = vdwg.mxu0
    %v735 = vadd.f32 %v228, %v727
    %v736 = vadd.f32 %v236, %v733
    %v737 = vmul.f32 %v735, 0.5
    %v738 = vtanh.pop %v737
    %v739 = vadd.f32 %v738, 1.0
    %v740 = vmul.f32 %v739, 0.5
    %v741 = vtanh.pop %v735
    %v742 = vmul.f32 %v740, %v621
    %744 = vrot.lane.b32.xlu0 %v741, 32
    %v745 = vpop.permute.xlu0 %744
    %v747 = vmul.f32 %v740, %v745
    %749 = vrot.lane.b32.xlu0 %v747, 32
    %v750 = vpop.permute.xlu0 %749
    %v752 = vadd.f32 %v742, %v750
    %v753 = vtanh.pop %v752
    %755 = vrot.lane.b32.xlu0 %v753, 32
    %v756 = vpop.permute.xlu0 %755
    %v758 = vmul.f32 %v740, %v756
    %v759 = vmul.f32 %v736, 0.5
    %v760 = vtanh.pop %v759
    %v761 = vadd.f32 %v760, 1.0
    %v762 = vmul.f32 %v761, 0.5
    %v763 = vtanh.pop %v736
    %v764 = vmul.f32 %v762, %v643
    %766 = vrot.lane.b32.xlu0 %v763, 32
    %v767 = vpop.permute.xlu0 %766
    %v769 = vmul.f32 %v762, %v767
    %771 = vrot.lane.b32.xlu0 %v769, 32
    %v772 = vpop.permute.xlu0 %771
    %v774 = vadd.f32 %v764, %v772
    %v775 = vtanh.pop %v774
    %777 = vrot.lane.b32.xlu0 %v775, 32
    %v778 = vpop.permute.xlu0 %777
    %v780 = vmul.f32 %v762, %v778
    %783 = vrot.lane.b32.xlu0 %v758, 64
    %v784 = vpop.permute.xlu0 %783
    %785 = vrot.lane.b32.xlu0 %v780, 64
    %v786 = vpop.permute.xlu0 %785
    %v787 = vsel %vm118, %v784, 0
    %v789 = vsel %vm118, %v786, 0
    %791 = vmatprep.subr.mxu0 %v257
    %792 = vmatpush1.msra.mxu0 %v256
    %793 = vmatprep.subr.mxu0 %v259
    %794 = vmatpush1.msra.mxu0 %v258
    %795 = vmatprep.subr.mxu0 %v261
    %796 = vmatpush1.msra.mxu0 %v260
    %797 = vmatprep.subr.mxu0 %v263
    %798 = vmatpush1.msra.mxu0 %v262
    %799 = vmatprep.subr.mxu0 0.0
    %800 = vmatpush1.msra.mxu0 0.0
    %801 = vmatprep.subr.mxu0 0.0
    %802 = vmatpush1.msra.mxu0 0.0
    %803 = vmatprep.subr.mxu0 0.0
    %804 = vmatpush1.msra.mxu0 0.0
    %805 = vmatprep.subr.mxu0 0.0
    %806 = vmatpush1.msra.mxu0 0.0
    %807 = vmatprep.subr.mxu0 0.0
    %808 = vmatpush1.msra.mxu0 0.0
    %809 = vmatprep.subr.mxu0 0.0
    %810 = vmatpush1.msra.mxu0 0.0
    %811 = vmatprep.subr.mxu0 0.0
    %812 = vmatpush1.msra.mxu0 0.0
    %813 = vmatprep.subr.mxu0 0.0
    %814 = vmatpush1.msra.mxu0 0.0
    %815 = vmatprep.subr.mxu0 0.0
    %816 = vmatpush1.msra.mxu0 0.0
    %817 = vmatprep.subr.mxu0 0.0
    %818 = vmatpush1.msra.mxu0 0.0
    %819 = vmatprep.subr.mxu0 0.0
    %820 = vmatpush1.msra.mxu0 0.0
    %821 = vmatprep.subr.mxu0 0.0
    %822 = vmatpush1.msra.mxu0 0.0
    %823 = vmatprep.subr.mxu0 0.0
    %824 = vmatpush1.msra.mxu0 0.0
    %825 = vmatprep.subr.mxu0 0.0
    %826 = vmatpush1.msra.mxu0 0.0
    %827 = vmatprep.subr.mxu0 0.0
    %828 = vmatpush1.msra.mxu0 0.0
    %829 = vmatprep.subr.mxu0 0.0
    %830 = vmatpush1.msra.mxu0 0.0
    %831 = vmatprep.subr.mxu0 0.0
    %832 = vmatpush1.msra.mxu0 0.0
    %833 = vmatprep.subr.mxu0 0.0
    %834 = vmatpush1.msra.mxu0 0.0
    %835 = vmatprep.subr.mxu0 0.0
    %836 = vmatpush1.msra.mxu0 0.0
    %837 = vmatprep.subr.mxu0 0.0
    %838 = vmatpush1.msra.mxu0 0.0
    %839 = vmatprep.subr.mxu0 0.0
    %840 = vmatpush1.msra.mxu0 0.0
    %841 = vmatprep.subr.mxu0 0.0
    %842 = vmatpush1.msra.mxu0 0.0
    %843 = vmatprep.subr.mxu0 0.0
    %844 = vmatpush1.msra.mxu0 0.0
    %845 = vmatprep.subr.mxu0 0.0
    %846 = vmatpush1.msra.mxu0 0.0
    %847 = vmatprep.subr.mxu0 0.0
    %848 = vmatpush1.msra.mxu0 0.0
    %849 = vmatprep.subr.mxu0 0.0
    %850 = vmatpush1.msra.mxu0 0.0
    %851 = vmatprep.subr.mxu0 0.0
    %852 = vmatpush1.msra.mxu0 0.0
    %853 = vmatprep.subr.mxu0 0.0
    %854 = vmatpush1.msra.mxu0 0.0
    %855 = vmatprep.mubr.f32.mxu0 0.0
    %856 = vmatmul.mubr.f32.gmra.mrb[0].mxu0 %v787
    %v857 = vpop.f32.mrb[0].mxu0
    %v858 = vadd.f32 0.0, %v857
    %v859 = vpop.f32.mrb[0].mxu0
    %860 = vmatprep.mubr.f32.mxu0 0.0
    %861 = vmatmul.mubr.f32.gmra.mrb[0].mxu0 %v789
    %v862 = vpop.f32.mrb[0].mxu0
    %v863 = vpop.f32.mrb[0].mxu0
    %v864 = vadd.f32 0.0, %v863
    %865 = vdwg.mxu0
    %v866 = vadd.f32 %v234, %v858
    %v867 = vadd.f32 %v230, %v864
    %v868 = vmul.f32 %v866, 0.5
    %v869 = vtanh.pop %v868
    %v870 = vadd.f32 %v869, 1.0
    %v871 = vmul.f32 %v870, 0.5
    %v872 = vtanh.pop %v866
    %v873 = vmul.f32 %v871, %v752
    %875 = vrot.lane.b32.xlu0 %v872, 32
    %v876 = vpop.permute.xlu0 %875
    %v878 = vmul.f32 %v871, %v876
    %880 = vrot.lane.b32.xlu0 %v878, 32
    %v881 = vpop.permute.xlu0 %880
    %v883 = vadd.f32 %v873, %v881
    %v884 = vtanh.pop %v883
    %886 = vrot.lane.b32.xlu0 %v884, 32
    %v887 = vpop.permute.xlu0 %886
    %v889 = vmul.f32 %v871, %v887
    %v890 = vmul.f32 %v867, 0.5
    %v891 = vtanh.pop %v890
    %v892 = vadd.f32 %v891, 1.0
    %v893 = vmul.f32 %v892, 0.5
    %v894 = vtanh.pop %v867
    %v895 = vmul.f32 %v893, %v774
    %897 = vrot.lane.b32.xlu0 %v894, 32
    %v898 = vpop.permute.xlu0 %897
    %v900 = vmul.f32 %v893, %v898
    %902 = vrot.lane.b32.xlu0 %v900, 32
    %v903 = vpop.permute.xlu0 %902
    %v905 = vadd.f32 %v895, %v903
    %v906 = vtanh.pop %v905
    %908 = vrot.lane.b32.xlu0 %v906, 32
    %v909 = vpop.permute.xlu0 %908
    %v911 = vmul.f32 %v893, %v909
    %914 = vrot.lane.b32.xlu0 %v889, 64
    %v915 = vpop.permute.xlu0 %914
    %916 = vrot.lane.b32.xlu0 %v911, 64
    %v917 = vpop.permute.xlu0 %916
    %v918 = vsel %vm118, %v915, 0
    %v920 = vsel %vm118, %v917, 0
    %922 = vmatprep.subr.mxu0 %v257
    %923 = vmatpush1.msra.mxu0 %v256
    %924 = vmatprep.subr.mxu0 %v259
    %925 = vmatpush1.msra.mxu0 %v258
    %926 = vmatprep.subr.mxu0 %v261
    %927 = vmatpush1.msra.mxu0 %v260
    %928 = vmatprep.subr.mxu0 %v263
    %929 = vmatpush1.msra.mxu0 %v262
    %930 = vmatprep.subr.mxu0 0.0
    %931 = vmatpush1.msra.mxu0 0.0
    %932 = vmatprep.subr.mxu0 0.0
    %933 = vmatpush1.msra.mxu0 0.0
    %934 = vmatprep.subr.mxu0 0.0
    %935 = vmatpush1.msra.mxu0 0.0
    %936 = vmatprep.subr.mxu0 0.0
    %937 = vmatpush1.msra.mxu0 0.0
    %938 = vmatprep.subr.mxu0 0.0
    %939 = vmatpush1.msra.mxu0 0.0
    %940 = vmatprep.subr.mxu0 0.0
    %941 = vmatpush1.msra.mxu0 0.0
    %942 = vmatprep.subr.mxu0 0.0
    %943 = vmatpush1.msra.mxu0 0.0
    %944 = vmatprep.subr.mxu0 0.0
    %945 = vmatpush1.msra.mxu0 0.0
    %946 = vmatprep.subr.mxu0 0.0
    %947 = vmatpush1.msra.mxu0 0.0
    %948 = vmatprep.subr.mxu0 0.0
    %949 = vmatpush1.msra.mxu0 0.0
    %950 = vmatprep.subr.mxu0 0.0
    %951 = vmatpush1.msra.mxu0 0.0
    %952 = vmatprep.subr.mxu0 0.0
    %953 = vmatpush1.msra.mxu0 0.0
    %954 = vmatprep.subr.mxu0 0.0
    %955 = vmatpush1.msra.mxu0 0.0
    %956 = vmatprep.subr.mxu0 0.0
    %957 = vmatpush1.msra.mxu0 0.0
    %958 = vmatprep.subr.mxu0 0.0
    %959 = vmatpush1.msra.mxu0 0.0
    %960 = vmatprep.subr.mxu0 0.0
    %961 = vmatpush1.msra.mxu0 0.0
    %962 = vmatprep.subr.mxu0 0.0
    %963 = vmatpush1.msra.mxu0 0.0
    %964 = vmatprep.subr.mxu0 0.0
    %965 = vmatpush1.msra.mxu0 0.0
    %966 = vmatprep.subr.mxu0 0.0
    %967 = vmatpush1.msra.mxu0 0.0
    %968 = vmatprep.subr.mxu0 0.0
    %969 = vmatpush1.msra.mxu0 0.0
    %970 = vmatprep.subr.mxu0 0.0
    %971 = vmatpush1.msra.mxu0 0.0
    %972 = vmatprep.subr.mxu0 0.0
    %973 = vmatpush1.msra.mxu0 0.0
    %974 = vmatprep.subr.mxu0 0.0
    %975 = vmatpush1.msra.mxu0 0.0
    %976 = vmatprep.subr.mxu0 0.0
    %977 = vmatpush1.msra.mxu0 0.0
    %978 = vmatprep.subr.mxu0 0.0
    %979 = vmatpush1.msra.mxu0 0.0
    %980 = vmatprep.subr.mxu0 0.0
    %981 = vmatpush1.msra.mxu0 0.0
    %982 = vmatprep.subr.mxu0 0.0
    %983 = vmatpush1.msra.mxu0 0.0
    %984 = vmatprep.subr.mxu0 0.0
    %985 = vmatpush1.msra.mxu0 0.0
    %986 = vmatprep.mubr.f32.mxu0 0.0
    %987 = vmatmul.mubr.f32.gmra.mrb[0].mxu0 %v918
    %v988 = vpop.f32.mrb[0].mxu0
    %v989 = vadd.f32 0.0, %v988
    %v990 = vpop.f32.mrb[0].mxu0
    %991 = vmatprep.mubr.f32.mxu0 0.0
    %992 = vmatmul.mubr.f32.gmra.mrb[0].mxu0 %v920
    %v993 = vpop.f32.mrb[0].mxu0
    %v994 = vpop.f32.mrb[0].mxu0
    %v995 = vadd.f32 0.0, %v994
    %996 = vdwg.mxu0
    %v997 = vadd.f32 %v240, %v989
    %v998 = vadd.f32 %v224, %v995
    %v999 = vmul.f32 %v997, 0.5
    %v1000 = vtanh.pop %v999
    %v1001 = vadd.f32 %v1000, 1.0
    %v1002 = vmul.f32 %v1001, 0.5
    %v1003 = vtanh.pop %v997
    %v1004 = vmul.f32 %v1002, %v883
    %1006 = vrot.lane.b32.xlu0 %v1003, 32
    %v1007 = vpop.permute.xlu0 %1006
    %v1009 = vmul.f32 %v1002, %v1007
    %1011 = vrot.lane.b32.xlu0 %v1009, 32
    %v1012 = vpop.permute.xlu0 %1011
    %v1014 = vadd.f32 %v1004, %v1012
    %v1015 = vtanh.pop %v1014
    %1017 = vrot.lane.b32.xlu0 %v1015, 32
    %v1018 = vpop.permute.xlu0 %1017
    %v1020 = vmul.f32 %v1002, %v1018
    %v1021 = vmul.f32 %v998, 0.5
    %v1022 = vtanh.pop %v1021
    %v1023 = vadd.f32 %v1022, 1.0
    %v1024 = vmul.f32 %v1023, 0.5
    %v1025 = vtanh.pop %v998
    %v1026 = vmul.f32 %v1024, %v905
    %1028 = vrot.lane.b32.xlu0 %v1025, 32
    %v1029 = vpop.permute.xlu0 %1028
    %v1031 = vmul.f32 %v1024, %v1029
    %1033 = vrot.lane.b32.xlu0 %v1031, 32
    %v1034 = vpop.permute.xlu0 %1033
    %v1036 = vadd.f32 %v1026, %v1034
    %v1037 = vtanh.pop %v1036
    %1039 = vrot.lane.b32.xlu0 %v1037, 32
    %v1040 = vpop.permute.xlu0 %1039
    %v1042 = vmul.f32 %v1024, %v1040
    %1045 = vrot.lane.b32.xlu0 %v1020, 64
    %v1046 = vpop.permute.xlu0 %1045
    %1047 = vrot.lane.b32.xlu0 %v1042, 64
    %v1048 = vpop.permute.xlu0 %1047
    %v1049 = vsel %vm118, %v1046, 0
    %v1051 = vsel %vm118, %v1048, 0
    %1053 = vmatprep.subr.mxu0 %v257
    %1054 = vmatpush1.msra.mxu0 %v256
    %1055 = vmatprep.subr.mxu0 %v259
    %1056 = vmatpush1.msra.mxu0 %v258
    %1057 = vmatprep.subr.mxu0 %v261
    %1058 = vmatpush1.msra.mxu0 %v260
    %1059 = vmatprep.subr.mxu0 %v263
    %1060 = vmatpush1.msra.mxu0 %v262
    %1061 = vmatprep.subr.mxu0 0.0
    %1062 = vmatpush1.msra.mxu0 0.0
    %1063 = vmatprep.subr.mxu0 0.0
    %1064 = vmatpush1.msra.mxu0 0.0
    %1065 = vmatprep.subr.mxu0 0.0
    %1066 = vmatpush1.msra.mxu0 0.0
    %1067 = vmatprep.subr.mxu0 0.0
    %1068 = vmatpush1.msra.mxu0 0.0
    %1069 = vmatprep.subr.mxu0 0.0
    %1070 = vmatpush1.msra.mxu0 0.0
    %1071 = vmatprep.subr.mxu0 0.0
    %1072 = vmatpush1.msra.mxu0 0.0
    %1073 = vmatprep.subr.mxu0 0.0
    %1074 = vmatpush1.msra.mxu0 0.0
    %1075 = vmatprep.subr.mxu0 0.0
    %1076 = vmatpush1.msra.mxu0 0.0
    %1077 = vmatprep.subr.mxu0 0.0
    %1078 = vmatpush1.msra.mxu0 0.0
    %1079 = vmatprep.subr.mxu0 0.0
    %1080 = vmatpush1.msra.mxu0 0.0
    %1081 = vmatprep.subr.mxu0 0.0
    %1082 = vmatpush1.msra.mxu0 0.0
    %1083 = vmatprep.subr.mxu0 0.0
    %1084 = vmatpush1.msra.mxu0 0.0
    %1085 = vmatprep.subr.mxu0 0.0
    %1086 = vmatpush1.msra.mxu0 0.0
    %1087 = vmatprep.subr.mxu0 0.0
    %1088 = vmatpush1.msra.mxu0 0.0
    %1089 = vmatprep.subr.mxu0 0.0
    %1090 = vmatpush1.msra.mxu0 0.0
    %1091 = vmatprep.subr.mxu0 0.0
    %1092 = vmatpush1.msra.mxu0 0.0
    %1093 = vmatprep.subr.mxu0 0.0
    %1094 = vmatpush1.msra.mxu0 0.0
    %1095 = vmatprep.subr.mxu0 0.0
    %1096 = vmatpush1.msra.mxu0 0.0
    %1097 = vmatprep.subr.mxu0 0.0
    %1098 = vmatpush1.msra.mxu0 0.0
    %1099 = vmatprep.subr.mxu0 0.0
    %1100 = vmatpush1.msra.mxu0 0.0
    %1101 = vmatprep.subr.mxu0 0.0
    %1102 = vmatpush1.msra.mxu0 0.0
    %1103 = vmatprep.subr.mxu0 0.0
    %1104 = vmatpush1.msra.mxu0 0.0
    %1105 = vmatprep.subr.mxu0 0.0
    %1106 = vmatpush1.msra.mxu0 0.0
    %1107 = vmatprep.subr.mxu0 0.0
    %1108 = vmatpush1.msra.mxu0 0.0
    %1109 = vmatprep.subr.mxu0 0.0
    %1110 = vmatpush1.msra.mxu0 0.0
    %1111 = vmatprep.subr.mxu0 0.0
    %1112 = vmatpush1.msra.mxu0 0.0
    %1113 = vmatprep.subr.mxu0 0.0
    %1114 = vmatpush1.msra.mxu0 0.0
    %1115 = vmatprep.subr.mxu0 0.0
    %1116 = vmatpush1.msra.mxu0 0.0
    %1117 = vmatprep.mubr.f32.mxu0 0.0
    %1118 = vmatmul.mubr.f32.gmra.mrb[0].mxu0 %v1049
    %v1119 = vpop.f32.mrb[0].mxu0
    %v1120 = vadd.f32 0.0, %v1119
    %v1121 = vpop.f32.mrb[0].mxu0
    %1122 = vmatprep.mubr.f32.mxu0 0.0
    %1123 = vmatmul.mubr.f32.gmra.mrb[0].mxu0 %v1051
    %v1124 = vpop.f32.mrb[0].mxu0
    %v1125 = vpop.f32.mrb[0].mxu0
    %v1126 = vadd.f32 0.0, %v1125
    %1127 = vdwg.mxu0
    %v1128 = vadd.f32 %v246, %v1120
    %v1129 = vadd.f32 %v218, %v1126
    %v1130 = vmul.f32 %v1128, 0.5
    %v1131 = vtanh.pop %v1130
    %v1132 = vadd.f32 %v1131, 1.0
    %v1133 = vmul.f32 %v1132, 0.5
    %v1134 = vtanh.pop %v1128
    %v1135 = vmul.f32 %v1133, %v1014
    %1137 = vrot.lane.b32.xlu0 %v1134, 32
    %v1138 = vpop.permute.xlu0 %1137
    %v1140 = vmul.f32 %v1133, %v1138
    %1142 = vrot.lane.b32.xlu0 %v1140, 32
    %v1143 = vpop.permute.xlu0 %1142
    %v1145 = vadd.f32 %v1135, %v1143
    %v1146 = vtanh.pop %v1145
    %1148 = vrot.lane.b32.xlu0 %v1146, 32
    %v1149 = vpop.permute.xlu0 %1148
    %v1151 = vmul.f32 %v1133, %v1149
    %v1152 = vmul.f32 %v1129, 0.5
    %v1153 = vtanh.pop %v1152
    %v1154 = vadd.f32 %v1153, 1.0
    %v1155 = vmul.f32 %v1154, 0.5
    %v1156 = vtanh.pop %v1129
    %v1157 = vmul.f32 %v1155, %v1036
    %1159 = vrot.lane.b32.xlu0 %v1156, 32
    %v1160 = vpop.permute.xlu0 %1159
    %v1162 = vmul.f32 %v1155, %v1160
    %1164 = vrot.lane.b32.xlu0 %v1162, 32
    %v1165 = vpop.permute.xlu0 %1164
    %v1167 = vadd.f32 %v1157, %v1165
    %v1168 = vtanh.pop %v1167
    %1170 = vrot.lane.b32.xlu0 %v1168, 32
    %v1171 = vpop.permute.xlu0 %1170
    %v1173 = vmul.f32 %v1155, %v1171
    %1176 = vrot.lane.b32.xlu0 %v1151, 64
    %v1177 = vpop.permute.xlu0 %1176
    %1178 = vrot.lane.b32.xlu0 %v1173, 64
    %v1179 = vpop.permute.xlu0 %1178
    %v1180 = vsel %vm118, %v1177, 0
    %v1182 = vsel %vm118, %v1179, 0
    %1184 = vmatprep.subr.mxu0 %v257
    %1185 = vmatpush1.msra.mxu0 %v256
    %1186 = vmatprep.subr.mxu0 %v259
    %1187 = vmatpush1.msra.mxu0 %v258
    %1188 = vmatprep.subr.mxu0 %v261
    %1189 = vmatpush1.msra.mxu0 %v260
    %1190 = vmatprep.subr.mxu0 %v263
    %1191 = vmatpush1.msra.mxu0 %v262
    %1192 = vmatprep.subr.mxu0 0.0
    %1193 = vmatpush1.msra.mxu0 0.0
    %1194 = vmatprep.subr.mxu0 0.0
    %1195 = vmatpush1.msra.mxu0 0.0
    %1196 = vmatprep.subr.mxu0 0.0
    %1197 = vmatpush1.msra.mxu0 0.0
    %1198 = vmatprep.subr.mxu0 0.0
    %1199 = vmatpush1.msra.mxu0 0.0
    %1200 = vmatprep.subr.mxu0 0.0
    %1201 = vmatpush1.msra.mxu0 0.0
    %1202 = vmatprep.subr.mxu0 0.0
    %1203 = vmatpush1.msra.mxu0 0.0
    %1204 = vmatprep.subr.mxu0 0.0
    %1205 = vmatpush1.msra.mxu0 0.0
    %1206 = vmatprep.subr.mxu0 0.0
    %1207 = vmatpush1.msra.mxu0 0.0
    %1208 = vmatprep.subr.mxu0 0.0
    %1209 = vmatpush1.msra.mxu0 0.0
    %1210 = vmatprep.subr.mxu0 0.0
    %1211 = vmatpush1.msra.mxu0 0.0
    %1212 = vmatprep.subr.mxu0 0.0
    %1213 = vmatpush1.msra.mxu0 0.0
    %1214 = vmatprep.subr.mxu0 0.0
    %1215 = vmatpush1.msra.mxu0 0.0
    %1216 = vmatprep.subr.mxu0 0.0
    %1217 = vmatpush1.msra.mxu0 0.0
    %1218 = vmatprep.subr.mxu0 0.0
    %1219 = vmatpush1.msra.mxu0 0.0
    %1220 = vmatprep.subr.mxu0 0.0
    %1221 = vmatpush1.msra.mxu0 0.0
    %1222 = vmatprep.subr.mxu0 0.0
    %1223 = vmatpush1.msra.mxu0 0.0
    %1224 = vmatprep.subr.mxu0 0.0
    %1225 = vmatpush1.msra.mxu0 0.0
    %1226 = vmatprep.subr.mxu0 0.0
    %1227 = vmatpush1.msra.mxu0 0.0
    %1228 = vmatprep.subr.mxu0 0.0
    %1229 = vmatpush1.msra.mxu0 0.0
    %1230 = vmatprep.subr.mxu0 0.0
    %1231 = vmatpush1.msra.mxu0 0.0
    %1232 = vmatprep.subr.mxu0 0.0
    %1233 = vmatpush1.msra.mxu0 0.0
    %1234 = vmatprep.subr.mxu0 0.0
    %1235 = vmatpush1.msra.mxu0 0.0
    %1236 = vmatprep.subr.mxu0 0.0
    %1237 = vmatpush1.msra.mxu0 0.0
    %1238 = vmatprep.subr.mxu0 0.0
    %1239 = vmatpush1.msra.mxu0 0.0
    %1240 = vmatprep.subr.mxu0 0.0
    %1241 = vmatpush1.msra.mxu0 0.0
    %1242 = vmatprep.subr.mxu0 0.0
    %1243 = vmatpush1.msra.mxu0 0.0
    %1244 = vmatprep.subr.mxu0 0.0
    %1245 = vmatpush1.msra.mxu0 0.0
    %1246 = vmatprep.subr.mxu0 0.0
    %1247 = vmatpush1.msra.mxu0 0.0
    %1248 = vmatprep.mubr.f32.mxu0 0.0
    %1249 = vmatmul.mubr.f32.gmra.mrb[0].mxu0 %v1180
    %v1250 = vpop.f32.mrb[0].mxu0
    %v1251 = vadd.f32 0.0, %v1250
    %v1252 = vpop.f32.mrb[0].mxu0
    %1253 = vmatprep.mubr.f32.mxu0 0.0
    %1254 = vmatmul.mubr.f32.gmra.mrb[0].mxu0 %v1182
    %v1255 = vpop.f32.mrb[0].mxu0
    %v1256 = vpop.f32.mrb[0].mxu0
    %v1257 = vadd.f32 0.0, %v1256
    %1258 = vdwg.mxu0
    %v1259 = vadd.f32 %v252, %v1251
    %v1260 = vadd.f32 %v212, %v1257
    %v1261 = vmul.f32 %v1259, 0.5
    %v1262 = vtanh.pop %v1261
    %v1263 = vadd.f32 %v1262, 1.0
    %v1264 = vmul.f32 %v1263, 0.5
    %v1265 = vtanh.pop %v1259
    %v1266 = vmul.f32 %v1264, %v1145
    %1268 = vrot.lane.b32.xlu0 %v1265, 32
    %v1269 = vpop.permute.xlu0 %1268
    %v1271 = vmul.f32 %v1264, %v1269
    %1273 = vrot.lane.b32.xlu0 %v1271, 32
    %v1274 = vpop.permute.xlu0 %1273
    %v1276 = vadd.f32 %v1266, %v1274
    %v1277 = vtanh.pop %v1276
    %1279 = vrot.lane.b32.xlu0 %v1277, 32
    %v1280 = vpop.permute.xlu0 %1279
    %v1282 = vmul.f32 %v1264, %v1280
    %v1283 = vmul.f32 %v1260, 0.5
    %v1284 = vtanh.pop %v1283
    %v1285 = vadd.f32 %v1284, 1.0
    %v1286 = vmul.f32 %v1285, 0.5
    %v1287 = vtanh.pop %v1260
    %v1288 = vmul.f32 %v1286, %v1167
    %1290 = vrot.lane.b32.xlu0 %v1287, 32
    %v1291 = vpop.permute.xlu0 %1290
    %v1293 = vmul.f32 %v1286, %v1291
    %1295 = vrot.lane.b32.xlu0 %v1293, 32
    %v1296 = vpop.permute.xlu0 %1295
    %v1298 = vadd.f32 %v1288, %v1296
    %v1299 = vtanh.pop %v1298
    %1301 = vrot.lane.b32.xlu0 %v1299, 32
    %v1302 = vpop.permute.xlu0 %1301
    %v1304 = vmul.f32 %v1286, %v1302
    %1307 = vrot.lane.b32.xlu0 %v1304, 96
    %v1308 = vpop.permute.xlu0 %1307
    %v1310 = vsel %vm118, %v391, %v1308
    %1312 = vrot.lane.b32.xlu0 %v1173, 96
    %v1313 = vpop.permute.xlu0 %1312
    %v1315 = vsel %vm118, %v522, %v1313
    %1317 = vrot.lane.b32.xlu0 %v1042, 96
    %v1318 = vpop.permute.xlu0 %1317
    %v1320 = vsel %vm118, %v653, %v1318
    %1322 = vrot.lane.b32.xlu0 %v911, 96
    %v1323 = vpop.permute.xlu0 %1322
    %v1325 = vsel %vm118, %v784, %v1323
    %1327 = vrot.lane.b32.xlu0 %v780, 96
    %v1328 = vpop.permute.xlu0 %1327
    %v1330 = vsel %vm118, %v915, %v1328
    %1332 = vrot.lane.b32.xlu0 %v649, 96
    %v1333 = vpop.permute.xlu0 %1332
    %v1335 = vsel %vm118, %v1046, %v1333
    %1337 = vrot.lane.b32.xlu0 %v518, 96
    %v1338 = vpop.permute.xlu0 %1337
    %v1340 = vsel %vm118, %v1177, %v1338
    %1342 = vrot.lane.b32.xlu0 %v1282, 64
    %v1343 = vpop.permute.xlu0 %1342
    %1345 = vrot.lane.b32.xlu0 %v387, 96
    %v1346 = vpop.permute.xlu0 %1345
    %v1348 = vsel %vm118, %v1343, %v1346
    %v1349 = vld [vmem:[#allocation4] sm:$0xff]
    %v1350 = vld [vmem:[#allocation4 + $0x8] sm:$0xff]
    %v1351 = vld [vmem:[#allocation4 + $0x10] sm:$0xff]
    %v1352 = vld [vmem:[#allocation4 + $0x18] sm:$0xff]
    %v1353 = vld [vmem:[#allocation4 + $0x20] sm:$0xff]
    %v1354 = vld [vmem:[#allocation4 + $0x28] sm:$0xff]
    %v1355 = vld [vmem:[#allocation4 + $0x30] sm:$0xff]
    %v1356 = vld [vmem:[#allocation4 + $0x38] sm:$0xff]
    %v1357 = vld [vmem:[#allocation4 + $0x40] sm:$0xff]
    %v1358 = vld [vmem:[#allocation4 + $0x48] sm:$0xff]
    %v1359 = vld [vmem:[#allocation4 + $0x50] sm:$0xff]
    %v1360 = vld [vmem:[#allocation4 + $0x58] sm:$0xff]
    %v1361 = vld [vmem:[#allocation4 + $0x60] sm:$0xff]
    %v1362 = vld [vmem:[#allocation4 + $0x68] sm:$0xff]
    %v1363 = vld [vmem:[#allocation4 + $0x70] sm:$0xff]
    %v1364 = vld [vmem:[#allocation4 + $0x78] sm:$0xff]
    %v1365 = vld [vmem:[#allocation4 + $0x80] sm:$0xff]
    %v1366 = vld [vmem:[#allocation4 + $0x88] sm:$0xff]
    %v1367 = vld [vmem:[#allocation4 + $0x90] sm:$0xff]
    %v1368 = vld [vmem:[#allocation4 + $0x98] sm:$0xff]
    %v1369 = vld [vmem:[#allocation4 + $0xa0] sm:$0xff]
    %v1370 = vld [vmem:[#allocation4 + $0xa8] sm:$0xff]
    %v1371 = vld [vmem:[#allocation4 + $0xb0] sm:$0xff]
    %v1372 = vld [vmem:[#allocation4 + $0xb8] sm:$0xff]
    %v1373 = vld [vmem:[#allocation4 + $0xc0] sm:$0xff]
    %v1374 = vld [vmem:[#allocation4 + $0xc8] sm:$0xff]
    %v1375 = vld [vmem:[#allocation4 + $0xd0] sm:$0xff]
    %v1376 = vld [vmem:[#allocation4 + $0xd8] sm:$0xff]
    %v1377 = vld [vmem:[#allocation4 + $0xe0] sm:$0xff]
    %v1378 = vld [vmem:[#allocation4 + $0xe8] sm:$0xff]
    %v1379 = vld [vmem:[#allocation4 + $0xf0] sm:$0xff]
    %v1380 = vld [vmem:[#allocation4 + $0xf8] sm:$0xff]
    %v1381 = vld [vmem:[%s5] sm:$0xf]
    %v1383 = vlaneseq
    %v1384 = vshrl.u32 %v1383, 7
    %v1385 = vsub.s32 0, %v1384
    %v1386 = vrot.slane %v1381, %v1385
    %v1387 = vlaneseq
    %v1388 = vshrl.u32 %v1387, 7
    %v1389 = vsub.s32 1, %v1388
    %v1390 = vrot.slane %v1381, %v1389
    %v1391 = vlaneseq
    %v1392 = vshrl.u32 %v1391, 7
    %v1393 = vsub.s32 2, %v1392
    %v1394 = vrot.slane %v1381, %v1393
    %v1395 = vlaneseq
    %v1396 = vshrl.u32 %v1395, 7
    %v1397 = vsub.s32 3, %v1396
    %v1398 = vrot.slane %v1381, %v1397
    %vm1403 = vcmask 523264
    %v1405 = vsel %vm1403, %v1310, 0
    %v1408 = vsel %vm1403, %v1315, 0
    %v1411 = vsel %vm1403, %v1320, 0
    %v1414 = vsel %vm1403, %v1325, 0
    %v1417 = vsel %vm1403, %v1330, 0
    %v1420 = vsel %vm1403, %v1335, 0
    %v1423 = vsel %vm1403, %v1340, 0
    %v1426 = vsel %vm1403, %v1348, 0
    %1428 = vmatprep.subr.mxu0 %v1350
    %1429 = vmatpush1.msra.mxu0 %v1349
    %1430 = vmatprep.subr.mxu0 %v1354
    %1431 = vmatpush1.msra.mxu0 %v1353
    %1432 = vmatprep.subr.mxu0 %v1358
    %1433 = vmatpush1.msra.mxu0 %v1357
    %1434 = vmatprep.subr.mxu0 %v1362
    %1435 = vmatpush1.msra.mxu0 %v1361
    %1436 = vmatprep.subr.mxu0 %v1366
    %1437 = vmatpush1.msra.mxu0 %v1365
    %1438 = vmatprep.subr.mxu0 %v1370
    %1439 = vmatpush1.msra.mxu0 %v1369
    %1440 = vmatprep.subr.mxu0 %v1374
    %1441 = vmatpush1.msra.mxu0 %v1373
    %1442 = vmatprep.subr.mxu0 %v1378
    %1443 = vmatpush1.msra.mxu0 %v1377
    %1444 = vmatprep.subr.mxu0 0.0
    %1445 = vmatpush1.msra.mxu0 0.0
    %1446 = vmatprep.subr.mxu0 0.0
    %1447 = vmatpush1.msra.mxu0 0.0
    %1448 = vmatprep.subr.mxu0 0.0
    %1449 = vmatpush1.msra.mxu0 0.0
    %1450 = vmatprep.subr.mxu0 0.0
    %1451 = vmatpush1.msra.mxu0 0.0
    %1452 = vmatprep.subr.mxu0 0.0
    %1453 = vmatpush1.msra.mxu0 0.0
    %1454 = vmatprep.subr.mxu0 0.0
    %1455 = vmatpush1.msra.mxu0 0.0
    %1456 = vmatprep.subr.mxu0 0.0
    %1457 = vmatpush1.msra.mxu0 0.0
    %1458 = vmatprep.subr.mxu0 0.0
    %1459 = vmatpush1.msra.mxu0 0.0
    %1460 = vmatprep.subr.mxu0 0.0
    %1461 = vmatpush1.msra.mxu0 0.0
    %1462 = vmatprep.subr.mxu0 0.0
    %1463 = vmatpush1.msra.mxu0 0.0
    %1464 = vmatprep.subr.mxu0 0.0
    %1465 = vmatpush1.msra.mxu0 0.0
    %1466 = vmatprep.subr.mxu0 0.0
    %1467 = vmatpush1.msra.mxu0 0.0
    %1468 = vmatprep.subr.mxu0 0.0
    %1469 = vmatpush1.msra.mxu0 0.0
    %1470 = vmatprep.subr.mxu0 0.0
    %1471 = vmatpush1.msra.mxu0 0.0
    %1472 = vmatprep.subr.mxu0 0.0
    %1473 = vmatpush1.msra.mxu0 0.0
    %1474 = vmatprep.subr.mxu0 0.0
    %1475 = vmatpush1.msra.mxu0 0.0
    %1476 = vmatprep.subr.mxu0 0.0
    %1477 = vmatpush1.msra.mxu0 0.0
    %1478 = vmatprep.subr.mxu0 0.0
    %1479 = vmatpush1.msra.mxu0 0.0
    %1480 = vmatprep.subr.mxu0 0.0
    %1481 = vmatpush1.msra.mxu0 0.0
    %1482 = vmatprep.subr.mxu0 0.0
    %1483 = vmatpush1.msra.mxu0 0.0
    %1484 = vmatprep.subr.mxu0 0.0
    %1485 = vmatpush1.msra.mxu0 0.0
    %1486 = vmatprep.subr.mxu0 0.0
    %1487 = vmatpush1.msra.mxu0 0.0
    %1488 = vmatprep.subr.mxu0 0.0
    %1489 = vmatpush1.msra.mxu0 0.0
    %1490 = vmatprep.subr.mxu0 0.0
    %1491 = vmatpush1.msra.mxu0 0.0
    %1492 = vmatprep.mubr.f32.mxu0 0.0
    %1493 = vmatmul.mubr.f32.gmra.mrb[0].mxu0 %v1405
    %v1494 = vpop.f32.mrb[0].mxu0
    %v1495 = vadd.f32 %v1386, %v1494
    %v1496 = vpop.f32.mrb[0].mxu0
    %v1497 = vadd.f32 %v1390, %v1496
    %1498 = vmatprep.mubr.f32.mxu0 0.0
    %1499 = vmatmul.mubr.f32.gmra.mrb[0].mxu0 %v1408
    %v1500 = vpop.f32.mrb[0].mxu0
    %v1501 = vadd.f32 %v1386, %v1500
    %v1502 = vpop.f32.mrb[0].mxu0
    %v1503 = vadd.f32 %v1390, %v1502
    %1504 = vmatprep.mubr.f32.mxu0 0.0
    %1505 = vmatmul.mubr.f32.gmra.mrb[0].mxu0 %v1411
    %v1506 = vpop.f32.mrb[0].mxu0
    %v1507 = vadd.f32 %v1386, %v1506
    %v1508 = vpop.f32.mrb[0].mxu0
    %v1509 = vadd.f32 %v1390, %v1508
    %1510 = vmatprep.mubr.f32.mxu0 0.0
    %1511 = vmatmul.mubr.f32.gmra.mrb[0].mxu0 %v1414
    %v1512 = vpop.f32.mrb[0].mxu0
    %v1513 = vadd.f32 %v1386, %v1512
    %v1514 = vpop.f32.mrb[0].mxu0
    %v1515 = vadd.f32 %v1390, %v1514
    %1516 = vmatprep.mubr.f32.mxu0 0.0
    %1517 = vmatmul.mubr.f32.gmra.mrb[0].mxu0 %v1417
    %v1518 = vpop.f32.mrb[0].mxu0
    %v1519 = vadd.f32 %v1386, %v1518
    %v1520 = vpop.f32.mrb[0].mxu0
    %v1521 = vadd.f32 %v1390, %v1520
    %1522 = vmatprep.mubr.f32.mxu0 0.0
    %1523 = vmatmul.mubr.f32.gmra.mrb[0].mxu0 %v1420
    %v1524 = vpop.f32.mrb[0].mxu0
    %v1525 = vadd.f32 %v1386, %v1524
    %v1526 = vpop.f32.mrb[0].mxu0
    %v1527 = vadd.f32 %v1390, %v1526
    %1528 = vmatprep.mubr.f32.mxu0 0.0
    %1529 = vmatmul.mubr.f32.gmra.mrb[0].mxu0 %v1423
    %v1530 = vpop.f32.mrb[0].mxu0
    %v1531 = vadd.f32 %v1386, %v1530
    %v1532 = vpop.f32.mrb[0].mxu0
    %v1533 = vadd.f32 %v1390, %v1532
    %1534 = vmatprep.mubr.f32.mxu0 0.0
    %1535 = vmatmul.mubr.f32.gmra.mrb[0].mxu0 %v1426
    %v1536 = vpop.f32.mrb[0].mxu0
    %v1537 = vadd.f32 %v1386, %v1536
    %v1538 = vpop.f32.mrb[0].mxu0
    %v1539 = vadd.f32 %v1390, %v1538
    %1540 = vdwg.mxu0
    %1541 = vmatprep.subr.mxu0 %v1352
    %1542 = vmatpush1.msra.mxu0 %v1351
    %1543 = vmatprep.subr.mxu0 %v1356
    %1544 = vmatpush1.msra.mxu0 %v1355
    %1545 = vmatprep.subr.mxu0 %v1360
    %1546 = vmatpush1.msra.mxu0 %v1359
    %1547 = vmatprep.subr.mxu0 %v1364
    %1548 = vmatpush1.msra.mxu0 %v1363
    %1549 = vmatprep.subr.mxu0 %v1368
    %1550 = vmatpush1.msra.mxu0 %v1367
    %1551 = vmatprep.subr.mxu0 %v1372
    %1552 = vmatpush1.msra.mxu0 %v1371
    %1553 = vmatprep.subr.mxu0 %v1376
    %1554 = vmatpush1.msra.mxu0 %v1375
    %1555 = vmatprep.subr.mxu0 %v1380
    %1556 = vmatpush1.msra.mxu0 %v1379
    %1557 = vmatprep.subr.mxu0 0.0
    %1558 = vmatpush1.msra.mxu0 0.0
    %1559 = vmatprep.subr.mxu0 0.0
    %1560 = vmatpush1.msra.mxu0 0.0
    %1561 = vmatprep.subr.mxu0 0.0
    %1562 = vmatpush1.msra.mxu0 0.0
    %1563 = vmatprep.subr.mxu0 0.0
    %1564 = vmatpush1.msra.mxu0 0.0
    %1565 = vmatprep.subr.mxu0 0.0
    %1566 = vmatpush1.msra.mxu0 0.0
    %1567 = vmatprep.subr.mxu0 0.0
    %1568 = vmatpush1.msra.mxu0 0.0
    %1569 = vmatprep.subr.mxu0 0.0
    %1570 = vmatpush1.msra.mxu0 0.0
    %1571 = vmatprep.subr.mxu0 0.0
    %1572 = vmatpush1.msra.mxu0 0.0
    %1573 = vmatprep.subr.mxu0 0.0
    %1574 = vmatpush1.msra.mxu0 0.0
    %1575 = vmatprep.subr.mxu0 0.0
    %1576 = vmatpush1.msra.mxu0 0.0
    %1577 = vmatprep.subr.mxu0 0.0
    %1578 = vmatpush1.msra.mxu0 0.0
    %1579 = vmatprep.subr.mxu0 0.0
    %1580 = vmatpush1.msra.mxu0 0.0
    %1581 = vmatprep.subr.mxu0 0.0
    %1582 = vmatpush1.msra.mxu0 0.0
    %1583 = vmatprep.subr.mxu0 0.0
    %1584 = vmatpush1.msra.mxu0 0.0
    %1585 = vmatprep.subr.mxu0 0.0
    %1586 = vmatpush1.msra.mxu0 0.0
    %1587 = vmatprep.subr.mxu0 0.0
    %1588 = vmatpush1.msra.mxu0 0.0
    %1589 = vmatprep.subr.mxu0 0.0
    %1590 = vmatpush1.msra.mxu0 0.0
    %1591 = vmatprep.subr.mxu0 0.0
    %1592 = vmatpush1.msra.mxu0 0.0
    %1593 = vmatprep.subr.mxu0 0.0
    %1594 = vmatpush1.msra.mxu0 0.0
    %1595 = vmatprep.subr.mxu0 0.0
    %1596 = vmatpush1.msra.mxu0 0.0
    %1597 = vmatprep.subr.mxu0 0.0
    %1598 = vmatpush1.msra.mxu0 0.0
    %1599 = vmatprep.subr.mxu0 0.0
    %1600 = vmatpush1.msra.mxu0 0.0
    %1601 = vmatprep.subr.mxu0 0.0
    %1602 = vmatpush1.msra.mxu0 0.0
    %1603 = vmatprep.subr.mxu0 0.0
    %1604 = vmatpush1.msra.mxu0 0.0
    %1605 = vmatprep.mubr.f32.mxu0 0.0
    %1606 = vmatmul.mubr.f32.gmra.mrb[0].mxu0 %v1405
    %v1607 = vpop.f32.mrb[0].mxu0
    %v1608 = vadd.f32 %v1394, %v1607
    %v1609 = vpop.f32.mrb[0].mxu0
    %v1610 = vadd.f32 %v1398, %v1609
    %1611 = vmatprep.mubr.f32.mxu0 0.0
    %1612 = vmatmul.mubr.f32.gmra.mrb[0].mxu0 %v1408
    %v1613 = vpop.f32.mrb[0].mxu0
    %v1614 = vadd.f32 %v1394, %v1613
    %v1615 = vpop.f32.mrb[0].mxu0
    %v1616 = vadd.f32 %v1398, %v1615
    %1617 = vmatprep.mubr.f32.mxu0 0.0
    %1618 = vmatmul.mubr.f32.gmra.mrb[0].mxu0 %v1411
    %v1619 = vpop.f32.mrb[0].mxu0
    %v1620 = vadd.f32 %v1394, %v1619
    %v1621 = vpop.f32.mrb[0].mxu0
    %v1622 = vadd.f32 %v1398, %v1621
    %1623 = vmatprep.mubr.f32.mxu0 0.0
    %1624 = vmatmul.mubr.f32.gmra.mrb[0].mxu0 %v1414
    %v1625 = vpop.f32.mrb[0].mxu0
    %v1626 = vadd.f32 %v1394, %v1625
    %v1627 = vpop.f32.mrb[0].mxu0
    %v1628 = vadd.f32 %v1398, %v1627
    %1629 = vmatprep.mubr.f32.mxu0 0.0
    %1630 = vmatmul.mubr.f32.gmra.mrb[0].mxu0 %v1417
    %v1631 = vpop.f32.mrb[0].mxu0
    %v1632 = vadd.f32 %v1394, %v1631
    %v1633 = vpop.f32.mrb[0].mxu0
    %v1634 = vadd.f32 %v1398, %v1633
    %1635 = vmatprep.mubr.f32.mxu0 0.0
    %1636 = vmatmul.mubr.f32.gmra.mrb[0].mxu0 %v1420
    %v1637 = vpop.f32.mrb[0].mxu0
    %v1638 = vadd.f32 %v1394, %v1637
    %v1639 = vpop.f32.mrb[0].mxu0
    %v1640 = vadd.f32 %v1398, %v1639
    %1641 = vmatprep.mubr.f32.mxu0 0.0
    %1642 = vmatmul.mubr.f32.gmra.mrb[0].mxu0 %v1423
    %v1643 = vpop.f32.mrb[0].mxu0
    %v1644 = vadd.f32 %v1394, %v1643
    %v1645 = vpop.f32.mrb[0].mxu0
    %v1646 = vadd.f32 %v1398, %v1645
    %1647 = vmatprep.mubr.f32.mxu0 0.0
    %1648 = vmatmul.mubr.f32.gmra.mrb[0].mxu0 %v1426
    %v1649 = vpop.f32.mrb[0].mxu0
    %v1650 = vadd.f32 %v1394, %v1649
    %v1651 = vpop.f32.mrb[0].mxu0
    %v1652 = vadd.f32 %v1398, %v1651
    %1653 = vdwg.mxu0
    %v1654 = vmul.f32 %v1495, 0.01
    %v1655 = vmul.f32 %v1497, 0.01
    %v1656 = vmul.f32 %v1608, 0.01
    %v1657 = vmul.f32 %v1610, 0.01
    %v1658 = vmul.f32 %v1501, 0.01
    %v1659 = vmul.f32 %v1503, 0.01
    %v1660 = vmul.f32 %v1614, 0.01
    %v1661 = vmul.f32 %v1616, 0.01
    %v1662 = vmul.f32 %v1507, 0.01
    %v1663 = vmul.f32 %v1509, 0.01
    %v1664 = vmul.f32 %v1620, 0.01
    %v1665 = vmul.f32 %v1622, 0.01
    %v1666 = vmul.f32 %v1513, 0.01
    %v1667 = vmul.f32 %v1515, 0.01
    %v1668 = vmul.f32 %v1626, 0.01
    %v1669 = vmul.f32 %v1628, 0.01
    %v1670 = vmul.f32 %v1519, 0.01
    %v1671 = vmul.f32 %v1521, 0.01
    %v1672 = vmul.f32 %v1632, 0.01
    %v1673 = vmul.f32 %v1634, 0.01
    %v1674 = vmul.f32 %v1525, 0.01
    %v1675 = vmul.f32 %v1527, 0.01
    %v1676 = vmul.f32 %v1638, 0.01
    %v1677 = vmul.f32 %v1640, 0.01
    %v1678 = vmul.f32 %v1531, 0.01
    %v1679 = vmul.f32 %v1533, 0.01
    %v1680 = vmul.f32 %v1644, 0.01
    %v1681 = vmul.f32 %v1646, 0.01
    %v1682 = vmul.f32 %v1537, 0.01
    %v1683 = vmul.f32 %v1539, 0.01
    %v1684 = vmul.f32 %v1650, 0.01
    %v1685 = vmul.f32 %v1652, 0.01
    %v1686 = vmax.f32 %v1495, %v1654
    %v1687 = vmax.f32 %v1497, %v1655
    %v1688 = vmax.f32 %v1608, %v1656
    %v1689 = vmax.f32 %v1610, %v1657
    %v1690 = vmax.f32 %v1501, %v1658
    %v1691 = vmax.f32 %v1503, %v1659
    %v1692 = vmax.f32 %v1614, %v1660
    %v1693 = vmax.f32 %v1616, %v1661
    %v1694 = vmax.f32 %v1507, %v1662
    %v1695 = vmax.f32 %v1509, %v1663
    %v1696 = vmax.f32 %v1620, %v1664
    %v1697 = vmax.f32 %v1622, %v1665
    %v1698 = vmax.f32 %v1513, %v1666
    %v1699 = vmax.f32 %v1515, %v1667
    %v1700 = vmax.f32 %v1626, %v1668
    %v1701 = vmax.f32 %v1628, %v1669
    %v1702 = vmax.f32 %v1519, %v1670
    %v1703 = vmax.f32 %v1521, %v1671
    %v1704 = vmax.f32 %v1632, %v1672
    %v1705 = vmax.f32 %v1634, %v1673
    %v1706 = vmax.f32 %v1525, %v1674
    %v1707 = vmax.f32 %v1527, %v1675
    %v1708 = vmax.f32 %v1638, %v1676
    %v1709 = vmax.f32 %v1640, %v1677
    %v1710 = vmax.f32 %v1531, %v1678
    %v1711 = vmax.f32 %v1533, %v1679
    %v1712 = vmax.f32 %v1644, %v1680
    %v1713 = vmax.f32 %v1646, %v1681
    %v1714 = vmax.f32 %v1537, %v1682
    %v1715 = vmax.f32 %v1539, %v1683
    %v1716 = vmax.f32 %v1650, %v1684
    %v1717 = vmax.f32 %v1652, %v1685
    %v1718 = vld [vmem:[#allocation6] sm:$0xff]
    %v1719 = vld [vmem:[#allocation6 + $0x8] sm:$0xff]
    %v1720 = vld [vmem:[#allocation6 + $0x10] sm:$0xff]
    %v1721 = vld [vmem:[#allocation6 + $0x18] sm:$0xff]
    %v1722 = vld [vmem:[#allocation6 + $0x20] sm:$0xff]
    %v1723 = vld [vmem:[#allocation6 + $0x28] sm:$0xff]
    %v1724 = vld [vmem:[#allocation6 + $0x30] sm:$0xff]
    %v1725 = vld [vmem:[#allocation6 + $0x38] sm:$0xff]
    %v1726 = vld [vmem:[#allocation6 + $0x40] sm:$0xff]
    %v1727 = vld [vmem:[#allocation6 + $0x48] sm:$0xff]
    %v1728 = vld [vmem:[#allocation6 + $0x50] sm:$0xff]
    %v1729 = vld [vmem:[#allocation6 + $0x58] sm:$0xff]
    %v1730 = vld [vmem:[#allocation6 + $0x60] sm:$0xff]
    %v1731 = vld [vmem:[#allocation6 + $0x68] sm:$0xff]
    %v1732 = vld [vmem:[#allocation6 + $0x70] sm:$0xff]
    %v1733 = vld [vmem:[#allocation6 + $0x78] sm:$0xff]
    %v1734 = vld [vmem:[#allocation6 + $0x80] sm:$0xff]
    %v1735 = vld [vmem:[#allocation6 + $0x88] sm:$0xff]
    %v1736 = vld [vmem:[#allocation6 + $0x90] sm:$0xff]
    %v1737 = vld [vmem:[#allocation6 + $0x98] sm:$0xff]
    %v1738 = vld [vmem:[#allocation6 + $0xa0] sm:$0xff]
    %v1739 = vld [vmem:[#allocation6 + $0xa8] sm:$0xff]
    %v1740 = vld [vmem:[#allocation6 + $0xb0] sm:$0xff]
    %v1741 = vld [vmem:[#allocation6 + $0xb8] sm:$0xff]
    %v1742 = vld [vmem:[#allocation6 + $0xc0] sm:$0xff]
    %v1743 = vld [vmem:[#allocation6 + $0xc8] sm:$0xff]
    %v1744 = vld [vmem:[#allocation6 + $0xd0] sm:$0xff]
    %v1745 = vld [vmem:[#allocation6 + $0xd8] sm:$0xff]
    %v1746 = vld [vmem:[#allocation6 + $0xe0] sm:$0xff]
    %v1747 = vld [vmem:[#allocation6 + $0xe8] sm:$0xff]
    %v1748 = vld [vmem:[#allocation6 + $0xf0] sm:$0xff]
    %v1749 = vld [vmem:[#allocation6 + $0xf8] sm:$0xff]
    %v1750 = vld [vmem:[#allocation6 + $0x100] sm:$0xff]
    %v1751 = vld [vmem:[#allocation6 + $0x108] sm:$0xff]
    %v1752 = vld [vmem:[#allocation6 + $0x110] sm:$0xff]
    %v1753 = vld [vmem:[#allocation6 + $0x118] sm:$0xff]
    %v1754 = vld [vmem:[#allocation6 + $0x120] sm:$0xff]
    %v1755 = vld [vmem:[#allocation6 + $0x128] sm:$0xff]
    %v1756 = vld [vmem:[#allocation6 + $0x130] sm:$0xff]
    %v1757 = vld [vmem:[#allocation6 + $0x138] sm:$0xff]
    %v1758 = vld [vmem:[#allocation6 + $0x140] sm:$0xff]
    %v1759 = vld [vmem:[#allocation6 + $0x148] sm:$0xff]
    %v1760 = vld [vmem:[#allocation6 + $0x150] sm:$0xff]
    %v1761 = vld [vmem:[#allocation6 + $0x158] sm:$0xff]
    %v1762 = vld [vmem:[#allocation6 + $0x160] sm:$0xff]
    %v1763 = vld [vmem:[#allocation6 + $0x168] sm:$0xff]
    %v1764 = vld [vmem:[#allocation6 + $0x170] sm:$0xff]
    %v1765 = vld [vmem:[#allocation6 + $0x178] sm:$0xff]
    %v1766 = vld [vmem:[#allocation6 + $0x180] sm:$0xff]
    %v1767 = vld [vmem:[#allocation6 + $0x188] sm:$0xff]
    %v1768 = vld [vmem:[#allocation6 + $0x190] sm:$0xff]
    %v1769 = vld [vmem:[#allocation6 + $0x198] sm:$0xff]
    %v1770 = vld [vmem:[#allocation6 + $0x1a0] sm:$0xff]
    %v1771 = vld [vmem:[#allocation6 + $0x1a8] sm:$0xff]
    %v1772 = vld [vmem:[#allocation6 + $0x1b0] sm:$0xff]
    %v1773 = vld [vmem:[#allocation6 + $0x1b8] sm:$0xff]
    %v1774 = vld [vmem:[#allocation6 + $0x1c0] sm:$0xff]
    %v1775 = vld [vmem:[#allocation6 + $0x1c8] sm:$0xff]
    %v1776 = vld [vmem:[#allocation6 + $0x1d0] sm:$0xff]
    %v1777 = vld [vmem:[#allocation6 + $0x1d8] sm:$0xff]
    %v1778 = vld [vmem:[#allocation6 + $0x1e0] sm:$0xff]
    %v1779 = vld [vmem:[#allocation6 + $0x1e8] sm:$0xff]
    %v1780 = vld [vmem:[#allocation6 + $0x1f0] sm:$0xff]
    %v1781 = vld [vmem:[#allocation6 + $0x1f8] sm:$0xff]
    %v1782 = vld [vmem:[%s7] sm:$0x1]
    %v1784 = vlaneseq
    %v1785 = vshrl.u32 %v1784, 7
    %v1786 = vsub.s32 0, %v1785
    %v1787 = vrot.slane %v1782, %v1786
    %1789 = vmatprep.subr.mxu0 0.0
    %1790 = vmatpush1.msra.mxu0 %v1718
    %1791 = vmatprep.subr.mxu0 0.0
    %1792 = vmatpush1.msra.mxu0 %v1719
    %1793 = vmatprep.subr.mxu0 0.0
    %1794 = vmatpush1.msra.mxu0 %v1720
    %1795 = vmatprep.subr.mxu0 0.0
    %1796 = vmatpush1.msra.mxu0 %v1721
    %1797 = vmatprep.subr.mxu0 0.0
    %1798 = vmatpush1.msra.mxu0 %v1722
    %1799 = vmatprep.subr.mxu0 0.0
    %1800 = vmatpush1.msra.mxu0 %v1723
    %1801 = vmatprep.subr.mxu0 0.0
    %1802 = vmatpush1.msra.mxu0 %v1724
    %1803 = vmatprep.subr.mxu0 0.0
    %1804 = vmatpush1.msra.mxu0 %v1725
    %1805 = vmatprep.subr.mxu0 0.0
    %1806 = vmatpush1.msra.mxu0 %v1726
    %1807 = vmatprep.subr.mxu0 0.0
    %1808 = vmatpush1.msra.mxu0 %v1727
    %1809 = vmatprep.subr.mxu0 0.0
    %1810 = vmatpush1.msra.mxu0 %v1728
    %1811 = vmatprep.subr.mxu0 0.0
    %1812 = vmatpush1.msra.mxu0 %v1729
    %1813 = vmatprep.subr.mxu0 0.0
    %1814 = vmatpush1.msra.mxu0 %v1730
    %1815 = vmatprep.subr.mxu0 0.0
    %1816 = vmatpush1.msra.mxu0 %v1731
    %1817 = vmatprep.subr.mxu0 0.0
    %1818 = vmatpush1.msra.mxu0 %v1732
    %1819 = vmatprep.subr.mxu0 0.0
    %1820 = vmatpush1.msra.mxu0 %v1733
    %1821 = vmatprep.subr.mxu0 0.0
    %1822 = vmatpush1.msra.mxu0 %v1734
    %1823 = vmatprep.subr.mxu0 0.0
    %1824 = vmatpush1.msra.mxu0 %v1735
    %1825 = vmatprep.subr.mxu0 0.0
    %1826 = vmatpush1.msra.mxu0 %v1736
    %1827 = vmatprep.subr.mxu0 0.0
    %1828 = vmatpush1.msra.mxu0 %v1737
    %1829 = vmatprep.subr.mxu0 0.0
    %1830 = vmatpush1.msra.mxu0 %v1738
    %1831 = vmatprep.subr.mxu0 0.0
    %1832 = vmatpush1.msra.mxu0 %v1739
    %1833 = vmatprep.subr.mxu0 0.0
    %1834 = vmatpush1.msra.mxu0 %v1740
    %1835 = vmatprep.subr.mxu0 0.0
    %1836 = vmatpush1.msra.mxu0 %v1741
    %1837 = vmatprep.subr.mxu0 0.0
    %1838 = vmatpush1.msra.mxu0 %v1742
    %1839 = vmatprep.subr.mxu0 0.0
    %1840 = vmatpush1.msra.mxu0 %v1743
    %1841 = vmatprep.subr.mxu0 0.0
    %1842 = vmatpush1.msra.mxu0 %v1744
    %1843 = vmatprep.subr.mxu0 0.0
    %1844 = vmatpush1.msra.mxu0 %v1745
    %1845 = vmatprep.subr.mxu0 0.0
    %1846 = vmatpush1.msra.mxu0 %v1746
    %1847 = vmatprep.subr.mxu0 0.0
    %1848 = vmatpush1.msra.mxu0 %v1747
    %1849 = vmatprep.subr.mxu0 0.0
    %1850 = vmatpush1.msra.mxu0 %v1748
    %1851 = vmatprep.subr.mxu0 0.0
    %1852 = vmatpush1.msra.mxu0 %v1749
    %1853 = vmatprep.mubr.f32.mxu0 %v1687
    %1854 = vmatmul.mubr.f32.gmra.mrb[0].mxu0 %v1686
    %v1855 = vpop.f32.mrb[0].mxu0
    %v1856 = vadd.f32 %v1787, %v1855
    %v1857 = vpop.f32.mrb[0].mxu0
    %1858 = vmatprep.mubr.f32.mxu0 %v1691
    %1859 = vmatmul.mubr.f32.gmra.mrb[0].mxu0 %v1690
    %v1860 = vpop.f32.mrb[0].mxu0
    %v1861 = vadd.f32 %v1787, %v1860
    %v1862 = vpop.f32.mrb[0].mxu0
    %1863 = vmatprep.mubr.f32.mxu0 %v1695
    %1864 = vmatmul.mubr.f32.gmra.mrb[0].mxu0 %v1694
    %v1865 = vpop.f32.mrb[0].mxu0
    %v1866 = vadd.f32 %v1787, %v1865
    %v1867 = vpop.f32.mrb[0].mxu0
    %1868 = vmatprep.mubr.f32.mxu0 %v1699
    %1869 = vmatmul.mubr.f32.gmra.mrb[0].mxu0 %v1698
    %v1870 = vpop.f32.mrb[0].mxu0
    %v1871 = vadd.f32 %v1787, %v1870
    %v1872 = vpop.f32.mrb[0].mxu0
    %1873 = vmatprep.mubr.f32.mxu0 %v1703
    %1874 = vmatmul.mubr.f32.gmra.mrb[0].mxu0 %v1702
    %v1875 = vpop.f32.mrb[0].mxu0
    %v1876 = vadd.f32 %v1787, %v1875
    %v1877 = vpop.f32.mrb[0].mxu0
    %1878 = vmatprep.mubr.f32.mxu0 %v1707
    %1879 = vmatmul.mubr.f32.gmra.mrb[0].mxu0 %v1706
    %v1880 = vpop.f32.mrb[0].mxu0
    %v1881 = vadd.f32 %v1787, %v1880
    %v1882 = vpop.f32.mrb[0].mxu0
    %1883 = vmatprep.mubr.f32.mxu0 %v1711
    %1884 = vmatmul.mubr.f32.gmra.mrb[0].mxu0 %v1710
    %v1885 = vpop.f32.mrb[0].mxu0
    %v1886 = vadd.f32 %v1787, %v1885
    %v1887 = vpop.f32.mrb[0].mxu0
    %1888 = vmatprep.mubr.f32.mxu0 %v1715
    %1889 = vmatmul.mubr.f32.gmra.mrb[0].mxu0 %v1714
    %v1890 = vpop.f32.mrb[0].mxu0
    %v1891 = vadd.f32 %v1787, %v1890
    %v1892 = vpop.f32.mrb[0].mxu0
    %1893 = vdwg.mxu0
    %1894 = vmatprep.subr.mxu0 0.0
    %1895 = vmatpush1.msra.mxu0 %v1750
    %1896 = vmatprep.subr.mxu0 0.0
    %1897 = vmatpush1.msra.mxu0 %v1751
    %1898 = vmatprep.subr.mxu0 0.0
    %1899 = vmatpush1.msra.mxu0 %v1752
    %1900 = vmatprep.subr.mxu0 0.0
    %1901 = vmatpush1.msra.mxu0 %v1753
    %1902 = vmatprep.subr.mxu0 0.0
    %1903 = vmatpush1.msra.mxu0 %v1754
    %1904 = vmatprep.subr.mxu0 0.0
    %1905 = vmatpush1.msra.mxu0 %v1755
    %1906 = vmatprep.subr.mxu0 0.0
    %1907 = vmatpush1.msra.mxu0 %v1756
    %1908 = vmatprep.subr.mxu0 0.0
    %1909 = vmatpush1.msra.mxu0 %v1757
    %1910 = vmatprep.subr.mxu0 0.0
    %1911 = vmatpush1.msra.mxu0 %v1758
    %1912 = vmatprep.subr.mxu0 0.0
    %1913 = vmatpush1.msra.mxu0 %v1759
    %1914 = vmatprep.subr.mxu0 0.0
    %1915 = vmatpush1.msra.mxu0 %v1760
    %1916 = vmatprep.subr.mxu0 0.0
    %1917 = vmatpush1.msra.mxu0 %v1761
    %1918 = vmatprep.subr.mxu0 0.0
    %1919 = vmatpush1.msra.mxu0 %v1762
    %1920 = vmatprep.subr.mxu0 0.0
    %1921 = vmatpush1.msra.mxu0 %v1763
    %1922 = vmatprep.subr.mxu0 0.0
    %1923 = vmatpush1.msra.mxu0 %v1764
    %1924 = vmatprep.subr.mxu0 0.0
    %1925 = vmatpush1.msra.mxu0 %v1765
    %1926 = vmatprep.subr.mxu0 0.0
    %1927 = vmatpush1.msra.mxu0 %v1766
    %1928 = vmatprep.subr.mxu0 0.0
    %1929 = vmatpush1.msra.mxu0 %v1767
    %1930 = vmatprep.subr.mxu0 0.0
    %1931 = vmatpush1.msra.mxu0 %v1768
    %1932 = vmatprep.subr.mxu0 0.0
    %1933 = vmatpush1.msra.mxu0 %v1769
    %1934 = vmatprep.subr.mxu0 0.0
    %1935 = vmatpush1.msra.mxu0 %v1770
    %1936 = vmatprep.subr.mxu0 0.0
    %1937 = vmatpush1.msra.mxu0 %v1771
    %1938 = vmatprep.subr.mxu0 0.0
    %1939 = vmatpush1.msra.mxu0 %v1772
    %1940 = vmatprep.subr.mxu0 0.0
    %1941 = vmatpush1.msra.mxu0 %v1773
    %1942 = vmatprep.subr.mxu0 0.0
    %1943 = vmatpush1.msra.mxu0 %v1774
    %1944 = vmatprep.subr.mxu0 0.0
    %1945 = vmatpush1.msra.mxu0 %v1775
    %1946 = vmatprep.subr.mxu0 0.0
    %1947 = vmatpush1.msra.mxu0 %v1776
    %1948 = vmatprep.subr.mxu0 0.0
    %1949 = vmatpush1.msra.mxu0 %v1777
    %1950 = vmatprep.subr.mxu0 0.0
    %1951 = vmatpush1.msra.mxu0 %v1778
    %1952 = vmatprep.subr.mxu0 0.0
    %1953 = vmatpush1.msra.mxu0 %v1779
    %1954 = vmatprep.subr.mxu0 0.0
    %1955 = vmatpush1.msra.mxu0 %v1780
    %1956 = vmatprep.subr.mxu0 0.0
    %1957 = vmatpush1.msra.mxu0 %v1781
    %1958 = vmatprep.mubr.f32.mxu0 %v1689
    %1959 = vmatmul.mubr.f32.gmra.mrb[0].mxu0 %v1688
    %v1960 = vpop.f32.mrb[0].mxu0
    %v1961 = vadd.f32 %v1856, %v1960
    %v1962 = vpop.f32.mrb[0].mxu0
    %1963 = vmatprep.mubr.f32.mxu0 %v1693
    %1964 = vmatmul.mubr.f32.gmra.mrb[0].mxu0 %v1692
    %v1965 = vpop.f32.mrb[0].mxu0
    %v1966 = vadd.f32 %v1861, %v1965
    %v1967 = vpop.f32.mrb[0].mxu0
    %1968 = vmatprep.mubr.f32.mxu0 %v1697
    %1969 = vmatmul.mubr.f32.gmra.mrb[0].mxu0 %v1696
    %v1970 = vpop.f32.mrb[0].mxu0
    %v1971 = vadd.f32 %v1866, %v1970
    %v1972 = vpop.f32.mrb[0].mxu0
    %1973 = vmatprep.mubr.f32.mxu0 %v1701
    %1974 = vmatmul.mubr.f32.gmra.mrb[0].mxu0 %v1700
    %v1975 = vpop.f32.mrb[0].mxu0
    %v1976 = vadd.f32 %v1871, %v1975
    %v1977 = vpop.f32.mrb[0].mxu0
    %1978 = vmatprep.mubr.f32.mxu0 %v1705
    %1979 = vmatmul.mubr.f32.gmra.mrb[0].mxu0 %v1704
    %v1980 = vpop.f32.mrb[0].mxu0
    %v1981 = vadd.f32 %v1876, %v1980
    %v1982 = vpop.f32.mrb[0].mxu0
    %1983 = vmatprep.mubr.f32.mxu0 %v1709
    %1984 = vmatmul.mubr.f32.gmra.mrb[0].mxu0 %v1708
    %v1985 = vpop.f32.mrb[0].mxu0
    %v1986 = vadd.f32 %v1881, %v1985
    %v1987 = vpop.f32.mrb[0].mxu0
    %1988 = vmatprep.mubr.f32.mxu0 %v1713
    %1989 = vmatmul.mubr.f32.gmra.mrb[0].mxu0 %v1712
    %v1990 = vpop.f32.mrb[0].mxu0
    %v1991 = vadd.f32 %v1886, %v1990
    %v1992 = vpop.f32.mrb[0].mxu0
    %1993 = vmatprep.mubr.f32.mxu0 %v1717
    %1994 = vmatmul.mubr.f32.gmra.mrb[0].mxu0 %v1716
    %v1995 = vpop.f32.mrb[0].mxu0
    %v1996 = vadd.f32 %v1891, %v1995
    %v1997 = vpop.f32.mrb[0].mxu0
    %1998 = vdwg.mxu0
    %v1999 = vmul.f32 %v1961, 0.01
    %v2000 = vmul.f32 %v1966, 0.01
    %v2001 = vmul.f32 %v1971, 0.01
    %v2002 = vmul.f32 %v1976, 0.01
    %v2003 = vmul.f32 %v1981, 0.01
    %v2004 = vmul.f32 %v1986, 0.01
    %v2005 = vmul.f32 %v1991, 0.01
    %v2006 = vmul.f32 %v1996, 0.01
    %v2007 = vmax.f32 %v1961, %v1999
    %v2008 = vmax.f32 %v1966, %v2000
    %v2009 = vmax.f32 %v1971, %v2001
    %v2010 = vmax.f32 %v1976, %v2002
    %v2011 = vmax.f32 %v1981, %v2003
    %v2012 = vmax.f32 %v1986, %v2004
    %v2013 = vmax.f32 %v1991, %v2005
    %v2014 = vmax.f32 %v1996, %v2006
    %v2015 = vld [vmem:[#allocation7] sm:$0xff]
    %v2016 = vld [vmem:[#allocation7 + $0x8] sm:$0xff]
    %v2017 = vld [vmem:[#allocation7 + $0x10] sm:$0xff]
    %v2018 = vld [vmem:[#allocation7 + $0x18] sm:$0xff]
    %v2019 = vld [vmem:[#allocation7 + $0x20] sm:$0xff]
    %v2020 = vld [vmem:[#allocation7 + $0x28] sm:$0xff]
    %v2021 = vld [vmem:[#allocation7 + $0x30] sm:$0xff]
    %v2022 = vld [vmem:[#allocation7 + $0x38] sm:$0xff]
    %v2023 = vld [vmem:[#allocation7 + $0x40] sm:$0xff]
    %v2024 = vld [vmem:[#allocation7 + $0x48] sm:$0xff]
    %v2025 = vld [vmem:[#allocation7 + $0x50] sm:$0xff]
    %v2026 = vld [vmem:[#allocation7 + $0x58] sm:$0xff]
    %v2027 = vld [vmem:[#allocation7 + $0x60] sm:$0xff]
    %v2028 = vld [vmem:[#allocation7 + $0x68] sm:$0xff]
    %v2029 = vld [vmem:[#allocation7 + $0x70] sm:$0xff]
    %v2030 = vld [vmem:[#allocation7 + $0x78] sm:$0xff]
    %v2031 = vld [vmem:[%s9] sm:$0x1]
    %v2033 = vlaneseq
    %v2034 = vshrl.u32 %v2033, 7
    %v2035 = vsub.s32 0, %v2034
    %v2036 = vrot.slane %v2031, %v2035
    %2038 = vmatprep.subr.mxu0 0.0
    %2039 = vmatpush1.msra.mxu0 %v2015
    %2040 = vmatprep.subr.mxu0 0.0
    %2041 = vmatpush1.msra.mxu0 %v2016
    %2042 = vmatprep.subr.mxu0 0.0
    %2043 = vmatpush1.msra.mxu0 %v2017
    %2044 = vmatprep.subr.mxu0 0.0
    %2045 = vmatpush1.msra.mxu0 %v2018
    %2046 = vmatprep.subr.mxu0 0.0
    %2047 = vmatpush1.msra.mxu0 %v2019
    %2048 = vmatprep.subr.mxu0 0.0
    %2049 = vmatpush1.msra.mxu0 %v2020
    %2050 = vmatprep.subr.mxu0 0.0
    %2051 = vmatpush1.msra.mxu0 %v2021
    %2052 = vmatprep.subr.mxu0 0.0
    %2053 = vmatpush1.msra.mxu0 %v2022
    %2054 = vmatprep.subr.mxu0 0.0
    %2055 = vmatpush1.msra.mxu0 %v2023
    %2056 = vmatprep.subr.mxu0 0.0
    %2057 = vmatpush1.msra.mxu0 %v2024
    %2058 = vmatprep.subr.mxu0 0.0
    %2059 = vmatpush1.msra.mxu0 %v2025
    %2060 = vmatprep.subr.mxu0 0.0
    %2061 = vmatpush1.msra.mxu0 %v2026
    %2062 = vmatprep.subr.mxu0 0.0
    %2063 = vmatpush1.msra.mxu0 %v2027
    %2064 = vmatprep.subr.mxu0 0.0
    %2065 = vmatpush1.msra.mxu0 %v2028
    %2066 = vmatprep.subr.mxu0 0.0
    %2067 = vmatpush1.msra.mxu0 %v2029
    %2068 = vmatprep.subr.mxu0 0.0
    %2069 = vmatpush1.msra.mxu0 %v2030
    %2070 = vmatprep.subr.mxu0 0.0
    %2071 = vmatpush1.msra.mxu0 0.0
    %2072 = vmatprep.subr.mxu0 0.0
    %2073 = vmatpush1.msra.mxu0 0.0
    %2074 = vmatprep.subr.mxu0 0.0
    %2075 = vmatpush1.msra.mxu0 0.0
    %2076 = vmatprep.subr.mxu0 0.0
    %2077 = vmatpush1.msra.mxu0 0.0
    %2078 = vmatprep.subr.mxu0 0.0
    %2079 = vmatpush1.msra.mxu0 0.0
    %2080 = vmatprep.subr.mxu0 0.0
    %2081 = vmatpush1.msra.mxu0 0.0
    %2082 = vmatprep.subr.mxu0 0.0
    %2083 = vmatpush1.msra.mxu0 0.0
    %2084 = vmatprep.subr.mxu0 0.0
    %2085 = vmatpush1.msra.mxu0 0.0
    %2086 = vmatprep.subr.mxu0 0.0
    %2087 = vmatpush1.msra.mxu0 0.0
    %2088 = vmatprep.subr.mxu0 0.0
    %2089 = vmatpush1.msra.mxu0 0.0
    %2090 = vmatprep.subr.mxu0 0.0
    %2091 = vmatpush1.msra.mxu0 0.0
    %2092 = vmatprep.subr.mxu0 0.0
    %2093 = vmatpush1.msra.mxu0 0.0
    %2094 = vmatprep.subr.mxu0 0.0
    %2095 = vmatpush1.msra.mxu0 0.0
    %2096 = vmatprep.subr.mxu0 0.0
    %2097 = vmatpush1.msra.mxu0 0.0
    %2098 = vmatprep.subr.mxu0 0.0
    %2099 = vmatpush1.msra.mxu0 0.0
    %2100 = vmatprep.subr.mxu0 0.0
    %2101 = vmatpush1.msra.mxu0 0.0
    %2102 = vmatprep.mubr.f32.mxu0 0.0
    %2103 = vmatmul.mubr.f32.gmra.mrb[0].mxu0 %v2007
    %v2104 = vpop.f32.mrb[0].mxu0
    %v2105 = vadd.f32 %v2036, %v2104
    %v2106 = vpop.f32.mrb[0].mxu0
    %2107 = vmatprep.mubr.f32.mxu0 0.0
    %2108 = vmatmul.mubr.f32.gmra.mrb[0].mxu0 %v2008
    %v2109 = vpop.f32.mrb[0].mxu0
    %v2110 = vadd.f32 %v2036, %v2109
    %v2111 = vpop.f32.mrb[0].mxu0
    %2112 = vmatprep.mubr.f32.mxu0 0.0
    %2113 = vmatmul.mubr.f32.gmra.mrb[0].mxu0 %v2009
    %v2114 = vpop.f32.mrb[0].mxu0
    %v2115 = vadd.f32 %v2036, %v2114
    %v2116 = vpop.f32.mrb[0].mxu0
    %2117 = vmatprep.mubr.f32.mxu0 0.0
    %2118 = vmatmul.mubr.f32.gmra.mrb[0].mxu0 %v2010
    %v2119 = vpop.f32.mrb[0].mxu0
    %v2120 = vadd.f32 %v2036, %v2119
    %v2121 = vpop.f32.mrb[0].mxu0
    %2122 = vmatprep.mubr.f32.mxu0 0.0
    %2123 = vmatmul.mubr.f32.gmra.mrb[0].mxu0 %v2011
    %v2124 = vpop.f32.mrb[0].mxu0
    %v2125 = vadd.f32 %v2036, %v2124
    %v2126 = vpop.f32.mrb[0].mxu0
    %2127 = vmatprep.mubr.f32.mxu0 0.0
    %2128 = vmatmul.mubr.f32.gmra.mrb[0].mxu0 %v2012
    %v2129 = vpop.f32.mrb[0].mxu0
    %v2130 = vadd.f32 %v2036, %v2129
    %v2131 = vpop.f32.mrb[0].mxu0
    %2132 = vmatprep.mubr.f32.mxu0 0.0
    %2133 = vmatmul.mubr.f32.gmra.mrb[0].mxu0 %v2013
    %v2134 = vpop.f32.mrb[0].mxu0
    %v2135 = vadd.f32 %v2036, %v2134
    %v2136 = vpop.f32.mrb[0].mxu0
    %2137 = vmatprep.mubr.f32.mxu0 0.0
    %2138 = vmatmul.mubr.f32.gmra.mrb[0].mxu0 %v2014
    %v2139 = vpop.f32.mrb[0].mxu0
    %v2140 = vadd.f32 %v2036, %v2139
    %v2141 = vpop.f32.mrb[0].mxu0
    %2142 = vdwg.mxu0
    %2143 = vst [vmem:[%s10] sm:$0xff] %v2105
    %2144 = vst [vmem:[%s10 + $0x8] sm:$0xff] %v2110
    %2145 = vst [vmem:[%s10 + $0x10] sm:$0xff] %v2115
    %2146 = vst [vmem:[%s10 + $0x18] sm:$0xff] %v2120
    %2147 = vst [vmem:[%s10 + $0x20] sm:$0xff] %v2125
    %2148 = vst [vmem:[%s10 + $0x28] sm:$0xff] %v2130
    %2149 = vst [vmem:[%s10 + $0x30] sm:$0xff] %v2135
    %2150 = vst [vmem:[%s10 + $0x38] sm:$0xff] %v2140
    // Predicated region
    $region58: #{sentiment_forward.1} parent=1 // pred_check
      _
    $region59: #{sentiment_forward.1} parent=1 // pred_check_branch
      %2152 = sbr.rel (0) target = $region61
    $region60: #{sentiment_forward.1} parent=1 // pred_region
      _
    $region61: #{sentiment_forward.1} parent=1 // pred_fallthru
      _
    // Predicated region
    $region62: #{sentiment_forward.1} parent=1 // pred_check
      _
    $region63: #{sentiment_forward.1} parent=1 // pred_check_branch
      %2154 = sbr.rel (0) target = $region65
    $region64: #{sentiment_forward.1} parent=1 // pred_region
      _
    $region65: #{sentiment_forward.1} parent=1 // pred_fallthru
      _
    %2155 = vsyncpa [#allocation3], 1
    %2156 = vsyncpa [#allocation5], 1
    %2157 = vsyncpa [#allocation8], 1

</llo_original>
